<compile_context>
chip_gen: v5e
topology: v5e:2x2
jax: 0.10.0
libtpu: 0.0.40
codegen_flags: <defaults>
</compile_context>

<pallas_src>
import functools
import math

import jax
import jax.numpy as jnp
from jax.experimental import pallas as pl
from jax.experimental.pallas import tpu as pltpu


def _layernorm(x, gamma, beta, eps=1e-5):
    mean = jnp.mean(x, axis=-1, keepdims=True)
    var = jnp.mean((x - mean) ** 2, axis=-1, keepdims=True)
    return (x - mean) * jax.lax.rsqrt(var + eps) * gamma + beta


def encoder_layer_kernel(
    x_q_ref, x_kv_ref,
    wq_ref, bq_ref, wk_ref, bk_ref, wv_ref, bv_ref, wo_ref, bo_ref,
    ln1_g_ref, ln1_b_ref,
    w1_ref, b1_ref, w2_ref, b2_ref,
    ln2_g_ref, ln2_b_ref,
    out_ref,
    k_cache, v_cache, x1_ref, x1b_ref, acc_ref,
    *, num_heads,
):
    si = pl.program_id(1)
    fi = pl.program_id(2)
    nf = pl.num_programs(2)

    nkv, _, TKV, hd = k_cache.shape
    TS, D = x1_ref.shape

    # ---- attention + residual + LayerNorm1 : once per (b, s) tile ----------
    @pl.when(fi == 0)
    def _attention_ln1():
        # K/V projection cache: filled once per batch element (seq tile 0),
        # reused by every subsequent query tile of this batch element.
        @pl.when(si == 0)
        def _fill_kv_cache():
            for t in range(nkv):                              # static unroll
                xkv_t = x_kv_ref[0, t * TKV:(t + 1) * TKV, :]  # (TKV, D) bf16
                k_t = jnp.dot(xkv_t, wk_ref[...],
                              preferred_element_type=jnp.float32) + bk_ref[...]
                v_t = jnp.dot(xkv_t, wv_ref[...],
                              preferred_element_type=jnp.float32) + bv_ref[...]
                k_cache[t] = jnp.swapaxes(
                    k_t.reshape(TKV, num_heads, hd), 0, 1).astype(jnp.bfloat16)
                v_cache[t] = jnp.swapaxes(
                    v_t.reshape(TKV, num_heads, hd), 0, 1).astype(jnp.bfloat16)

        # Q projection for this seq tile (bf16 operands, f32 MXU accumulation).
        xq = x_q_ref[0]                                       # (TS, D) f32
        q = jnp.dot(xq.astype(jnp.bfloat16), wq_ref[...],
                    preferred_element_type=jnp.float32) + bq_ref[...]
        qh = jnp.swapaxes(q.reshape(TS, num_heads, hd), 0, 1).astype(jnp.bfloat16)

        # Flash-style online softmax over KV tiles (bounded live set).
        scale = 1.0 / math.sqrt(hd)
        m_i = jnp.full((num_heads, TS, 1), -jnp.inf, jnp.float32)
        l_i = jnp.zeros((num_heads, TS, 1), jnp.float32)
        ctx = jnp.zeros((num_heads, TS, hd), jnp.float32)
        for t in range(nkv):                                  # static unroll
            kh = k_cache[t]                                   # (H, TKV, hd) bf16
            vh = v_cache[t]
            s_t = jnp.einsum("hqd,hkd->hqk", qh, kh,
                             preferred_element_type=jnp.float32) * scale
            m_new = jnp.maximum(m_i, jnp.max(s_t, axis=-1, keepdims=True))
            alpha = jnp.exp(m_i - m_new)
            p = jnp.exp(s_t - m_new)
            l_i = alpha * l_i + jnp.sum(p, axis=-1, keepdims=True)
            ctx = alpha * ctx + jnp.einsum("hqk,hkd->hqd",
                                           p.astype(jnp.bfloat16), vh,
                                           preferred_element_type=jnp.float32)
            m_i = m_new

        ctx = ctx * pl.reciprocal(l_i, approx=False)          # exact normalize
        ctx = jnp.swapaxes(ctx, 0, 1).reshape(TS, D)

        attn_out = jnp.dot(ctx.astype(jnp.bfloat16), wo_ref[...],
                           preferred_element_type=jnp.float32) + bo_ref[...]

        x1 = _layernorm(xq + attn_out, ln1_g_ref[...], ln1_b_ref[...])
        x1_ref[...] = x1
        x1b_ref[...] = x1.astype(jnp.bfloat16)
        acc_ref[...] = jnp.zeros(acc_ref.shape, acc_ref.dtype)

    # ---- FeedForward: one d_ff tile per grid step, f32 accumulation --------
    h = jnp.dot(x1b_ref[...], w1_ref[...],
                preferred_element_type=jnp.float32) + b1_ref[...]
    h = jnp.maximum(h, 0.0)
    acc_ref[...] += jnp.dot(h.astype(jnp.bfloat16), w2_ref[...],
                            preferred_element_type=jnp.float32)

    # ---- residual + LayerNorm2 + writeback : last d_ff tile ----------------
    @pl.when(fi == nf - 1)
    def _finalize():
        ff = acc_ref[...] + b2_ref[...]
        x2 = _layernorm(x1_ref[...] + ff, ln2_g_ref[...], ln2_b_ref[...])
        out_ref[0] = x2.astype(out_ref.dtype)


def _vmem_capacity_bytes():
    try:
        info = pltpu.get_tpu_info()
        cap = getattr(info, "vmem_capacity_bytes", None)
        if cap:
            return int(cap)
    except Exception:
        pass
    return 64 << 20   # conservative default (v7x per-TensorCore VMEM)


def _pick_tile(total, cap, align):
    """Largest divisor of `total` that is <= cap and a multiple of `align`."""
    if total <= cap:
        return total
    for t in range(cap, 0, -1):
        if total % t == 0 and t % align == 0:
            return t
    return total


def _vmem_limit_bytes(S, TS, TKV, D, FF, TF, H, ffn_resident, vmem_cap):
    f32, bf16 = 4, 2
    hd = D // H
    hd_pad = max(hd, 128)            # lane padding of the head-split scratch
    nkv = S // TKV

    # pipeline blocks (double-buffered where the block index changes)
    blocks = 2 * TS * D * f32                      # x query block
    blocks += 2 * S * D * bf16                     # x K/V block (bf16)
    blocks += 2 * TS * D * f32                     # output block
    blocks += 4 * D * D * bf16                     # wq/wk/wv/wo (const index)
    if ffn_resident:
        blocks += 2 * D * FF * bf16 + FF * f32     # w1/w2 resident + b1
    else:
        blocks += 2 * (D * TF + TF * D) * bf16 + 2 * TF * f32
    blocks += 12 * D * f32                         # biases + LN params

    # persistent scratch
    scratch = 2 * nkv * H * TKV * hd_pad * bf16    # K/V cache
    scratch += TS * D * (f32 + bf16 + f32)         # x1, x1 bf16, FFN acc

    # transient per-step temporaries
    attn_tmp = (3 * H * TS * TKV * f32             # scores / p / exp temps
                + H * TS * hd_pad * (f32 + bf16)   # ctx acc + qh
                + 2 * H * TS * 128 * f32           # m_i, l_i (lane-padded)
                + 4 * TS * D * f32)                # ctx relayout / LN temps
    ffn_tmp = TS * TF * (f32 + bf16)

    est = blocks + scratch + attn_tmp + ffn_tmp + (8 << 20)
    ceiling = int(vmem_cap * 0.85)                 # leave compiler headroom
    return int(max(32 << 20, min(est, ceiling)))


def encoder_layer(x, params, num_heads, *, seq_tile=None, ff_tile=None, kv_tile=None):
    B, S, D = x.shape
    FF = params["w1"].shape[1]
    assert D % num_heads == 0, "d_model must be divisible by num_heads"
    hd = D // num_heads

    vmem_cap = _vmem_capacity_bytes()

    # Sequence tile: 128 by default, 256 on 128-MiB-VMEM chips (v5e/v6e).
    max_ts = 256 if vmem_cap >= (96 << 20) else 128
    TS = seq_tile if seq_tile is not None else _pick_tile(S, max_ts, 8)
    TKV = kv_tile if kv_tile is not None else _pick_tile(S, 512, 8)

    # FFN weights fully resident when their bf16 footprint fits comfortably.
    if ff_tile is not None:
        TF = ff_tile
    elif 2 * D * FF * 2 <= vmem_cap // 4:
        TF = FF
    else:
        TF = _pick_tile(FF, 2048, 128)
    ffn_resident = (TF == FF)

    assert S % TS == 0 and S % TKV == 0 and FF % TF == 0
    assert TS == S or TS % 8 == 0
    assert TF == FF or TF % 128 == 0

    bf16 = jnp.bfloat16
    # bf16 weights for the MXU; biases / LayerNorm params stay f32.
    wq = params["wq"].astype(bf16)
    wk = params["wk"].astype(bf16)
    wv = params["wv"].astype(bf16)
    wo = params["wo"].astype(bf16)
    w1 = params["w1"].astype(bf16)
    w2 = params["w2"].astype(bf16)
    x_kv = x.astype(bf16)   # K/V copy of x in bf16: halves DMA + residency

    inputs = [
        x, x_kv,
        wq, params["bq"], wk, params["bk"], wv, params["bv"], wo, params["bo"],
        params["ln1_g"], params["ln1_b"],
        w1, params["b1"], w2, params["b2"],
        params["ln2_g"], params["ln2_b"],
    ]

    def const_spec(arr):
        nd = arr.ndim
        return pl.BlockSpec(arr.shape, lambda b, s, f, _nd=nd: (0,) * _nd)

    in_specs = [
        pl.BlockSpec((1, TS, D), lambda b, s, f: (b, s, 0)),   # x: query rows (f32)
        pl.BlockSpec((1, S, D), lambda b, s, f: (b, 0, 0)),    # x: full seq for K/V (bf16)
        const_spec(wq), const_spec(params["bq"]),
        const_spec(wk), const_spec(params["bk"]),
        const_spec(wv), const_spec(params["bv"]),
        const_spec(wo), const_spec(params["bo"]),
        const_spec(params["ln1_g"]), const_spec(params["ln1_b"]),
        pl.BlockSpec((D, TF), lambda b, s, f: (0, f)),         # w1 d_ff tile
        pl.BlockSpec((1, TF), lambda b, s, f: (0, f)),         # b1 d_ff tile
        pl.BlockSpec((TF, D), lambda b, s, f: (f, 0)),         # w2 d_ff tile
        const_spec(params["b2"]),
        const_spec(params["ln2_g"]), const_spec(params["ln2_b"]),
    ]

    kernel = functools.partial(encoder_layer_kernel, num_heads=num_heads)

    return pl.pallas_call(
        kernel,
        out_shape=jax.ShapeDtypeStruct((B, S, D), x.dtype),
        grid_spec=pltpu.PrefetchScalarGridSpec(
            num_scalar_prefetch=0,
            grid=(B, S // TS, FF // TF),
            in_specs=in_specs,
            out_specs=pl.BlockSpec((1, TS, D), lambda b, s, f: (b, s, 0)),
            scratch_shapes=[
                pltpu.VMEM((S // TKV, num_heads, TKV, hd), bf16),  # K cache
                pltpu.VMEM((S // TKV, num_heads, TKV, hd), bf16),  # V cache
                pltpu.VMEM((TS, D), jnp.float32),  # x1 (post-LN1, for residual2)
                pltpu.VMEM((TS, D), bf16),         # x1 bf16 (FFN matmul operand)
                pltpu.VMEM((TS, D), jnp.float32),  # FFN f32 accumulator
            ],
        ),
        compiler_params=pltpu.CompilerParams(
            # batch is "parallel" (megacore); seq MUST be "arbitrary" because the
            # K/V cache scratch is filled at seq tile 0 and reused by later tiles.
            dimension_semantics=("parallel", "arbitrary", "arbitrary"),
            vmem_limit_bytes=_vmem_limit_bytes(
                S, TS, TKV, D, FF, TF, num_heads, ffn_resident, vmem_cap),
        ),
    )(*inputs)


def make_params(key, d_model, num_heads, d_ff):
    ks = jax.random.split(key, 12)
    std = 0.05

    def w(k, shape):
        return jax.random.normal(k, shape, jnp.float32) * std

    return {
        # Linear weights pre-transposed to (in, out) so y = x @ W + b
        "wq": w(ks[0], (d_model, d_model)), "bq": w(ks[1], (1, d_model)),
        "wk": w(ks[2], (d_model, d_model)), "bk": w(ks[3], (1, d_model)),
        "wv": w(ks[4], (d_model, d_model)), "bv": w(ks[5], (1, d_model)),
        "wo": w(ks[6], (d_model, d_model)), "bo": w(ks[7], (1, d_model)),
        "ln1_g": jnp.ones((1, d_model), jnp.float32),
        "ln1_b": jnp.zeros((1, d_model), jnp.float32),
        "w1": w(ks[8], (d_model, d_ff)), "b1": w(ks[9], (1, d_ff)),
        "w2": w(ks[10], (d_ff, d_model)), "b2": w(ks[11], (1, d_model)),
        "ln2_g": jnp.ones((1, d_model), jnp.float32),
        "ln2_b": jnp.zeros((1, d_model), jnp.float32),
    }


def reference_encoder_layer(x, p, num_heads):
    B, S, D = x.shape
    hd = D // num_heads

    def lin(a, w, b):
        return a @ w + b

    q = lin(x, p["wq"], p["bq"]).reshape(B, S, num_heads, hd).transpose(0, 2, 1, 3)
    k = lin(x, p["wk"], p["bk"]).reshape(B, S, num_heads, hd).transpose(0, 2, 1, 3)
    v = lin(x, p["wv"], p["bv"]).reshape(B, S, num_heads, hd).transpose(0, 2, 1, 3)
    scores = jnp.einsum("bhqd,bhkd->bhqk", q, k) / math.sqrt(hd)
    attn = jax.nn.softmax(scores, axis=-1)
    o = jnp.einsum("bhqk,bhkd->bhqd", attn, v).transpose(0, 2, 1, 3).reshape(B, S, D)
    o = lin(o, p["wo"], p["bo"])
    x1 = _layernorm(x + o, p["ln1_g"], p["ln1_b"])
    ff = lin(jnp.maximum(lin(x1, p["w1"], p["b1"]), 0.0), p["w2"], p["b2"])
    return _layernorm(x1 + ff, p["ln2_g"], p["ln2_b"])


if __name__ == "__main__":
    B, S, D, H, FF = 2, 8, 32, 4, 64
    key = jax.random.PRNGKey(0)
    kx, kp = jax.random.split(key)
    x = jax.random.normal(kx, (B, S, D), jnp.float32)
    params = make_params(kp, D, H, FF)

    out = encoder_layer(x, params, H)
    out = jax.block_until_ready(out)

    ref = reference_encoder_layer(x, params, H)
    assert out.shape == (B, S, D)
    # bf16 matmul operands with f32 accumulation -> loosened tolerance vs f32 ref
    assert jnp.allclose(out, ref, atol=3e-2, rtol=3e-2), "mismatch vs reference"

    print("KERNEL_OK")
</pallas_src>

<mosaic_0001>
module attributes {stable_mosaic.version = 11 : i64} {
  func.func @encoder_layer_kernel(%arg0: i32, %arg1: i32, %arg2: i32, %arg3: memref<1x8x32xf32, #tpu.memory_space<vmem>>, %arg4: memref<1x8x32xbf16, #tpu.memory_space<vmem>>, %arg5: memref<32x32xbf16, #tpu.memory_space<vmem>>, %arg6: memref<1x32xf32, #tpu.memory_space<vmem>>, %arg7: memref<32x32xbf16, #tpu.memory_space<vmem>>, %arg8: memref<1x32xf32, #tpu.memory_space<vmem>>, %arg9: memref<32x32xbf16, #tpu.memory_space<vmem>>, %arg10: memref<1x32xf32, #tpu.memory_space<vmem>>, %arg11: memref<32x32xbf16, #tpu.memory_space<vmem>>, %arg12: memref<1x32xf32, #tpu.memory_space<vmem>>, %arg13: memref<1x32xf32, #tpu.memory_space<vmem>>, %arg14: memref<1x32xf32, #tpu.memory_space<vmem>>, %arg15: memref<32x64xbf16, #tpu.memory_space<vmem>>, %arg16: memref<1x64xf32, #tpu.memory_space<vmem>>, %arg17: memref<64x32xbf16, #tpu.memory_space<vmem>>, %arg18: memref<1x32xf32, #tpu.memory_space<vmem>>, %arg19: memref<1x32xf32, #tpu.memory_space<vmem>>, %arg20: memref<1x32xf32, #tpu.memory_space<vmem>>, %arg21: memref<1x8x32xf32, #tpu.memory_space<vmem>>, %arg22: memref<1x4x8x8xbf16, #tpu.memory_space<vmem>>, %arg23: memref<1x4x8x8xbf16, #tpu.memory_space<vmem>>, %arg24: memref<8x32xf32, #tpu.memory_space<vmem>>, %arg25: memref<8x32xbf16, #tpu.memory_space<vmem>>, %arg26: memref<8x32xf32, #tpu.memory_space<vmem>>) attributes {dimension_semantics = [#tpu.dimension_semantics<parallel>, #tpu.dimension_semantics<arbitrary>, #tpu.dimension_semantics<arbitrary>], iteration_bounds = array<i64: 2, 1, 1>, scalar_prefetch = 0 : i64, scratch_operands = 5 : i64, tpu.core_type = #tpu.core_type<tc>, window_params = [{transform_indices = @transform_0, window_bounds = array<i64: 1, 8, 32>}, {transform_indices = @transform_1, window_bounds = array<i64: 1, 8, 32>}, {pipeline_mode = #tpu.pipeline_mode<synchronous>, transform_indices = @transform_2, window_bounds = array<i64: 32, 32>}, {pipeline_mode = #tpu.pipeline_mode<synchronous>, transform_indices = @transform_3, window_bounds = array<i64: 1, 32>}, {pipeline_mode = #tpu.pipeline_mode<synchronous>, transform_indices = @transform_4, window_bounds = array<i64: 32, 32>}, {pipeline_mode = #tpu.pipeline_mode<synchronous>, transform_indices = @transform_5, window_bounds = array<i64: 1, 32>}, {pipeline_mode = #tpu.pipeline_mode<synchronous>, transform_indices = @transform_6, window_bounds = array<i64: 32, 32>}, {pipeline_mode = #tpu.pipeline_mode<synchronous>, transform_indices = @transform_7, window_bounds = array<i64: 1, 32>}, {pipeline_mode = #tpu.pipeline_mode<synchronous>, transform_indices = @transform_8, window_bounds = array<i64: 32, 32>}, {pipeline_mode = #tpu.pipeline_mode<synchronous>, transform_indices = @transform_9, window_bounds = array<i64: 1, 32>}, {pipeline_mode = #tpu.pipeline_mode<synchronous>, transform_indices = @transform_10, window_bounds = array<i64: 1, 32>}, {pipeline_mode = #tpu.pipeline_mode<synchronous>, transform_indices = @transform_11, window_bounds = array<i64: 1, 32>}, {transform_indices = @transform_12, window_bounds = array<i64: 32, 64>}, {transform_indices = @transform_13, window_bounds = array<i64: 1, 64>}, {transform_indices = @transform_14, window_bounds = array<i64: 64, 32>}, {pipeline_mode = #tpu.pipeline_mode<synchronous>, transform_indices = @transform_15, window_bounds = array<i64: 1, 32>}, {pipeline_mode = #tpu.pipeline_mode<synchronous>, transform_indices = @transform_16, window_bounds = array<i64: 1, 32>}, {pipeline_mode = #tpu.pipeline_mode<synchronous>, transform_indices = @transform_17, window_bounds = array<i64: 1, 32>}, {transform_indices = @transform_18, window_bounds = array<i64: 1, 8, 32>}]} {
    %c0_i32 = arith.constant 0 : i32
    %0 = arith.cmpi eq, %arg2, %c0_i32 : i32
    %1 = arith.extui %0 : i1 to i32
    %c0_i32_0 = arith.constant 0 : i32
    %2 = arith.cmpi ne, %1, %c0_i32_0 : i32
    scf.if %2 {
      %c0_i32_16 = arith.constant 0 : i32
      %20 = arith.cmpi eq, %arg1, %c0_i32_16 : i32
      %21 = arith.extui %20 : i1 to i32
      %c0_i32_17 = arith.constant 0 : i32
      %22 = arith.cmpi ne, %21, %c0_i32_17 : i32
      scf.if %22 {
        %c0_63 = arith.constant 0 : index
        %c0_64 = arith.constant 0 : index
        %c0_65 = arith.constant 0 : index
        %102 = vector.load %arg4[%c0_63, %c0_64, %c0_65] : memref<1x8x32xbf16, #tpu.memory_space<vmem>>, vector<1x8x32xbf16>
        %103 = vector.shape_cast %102 : vector<1x8x32xbf16> to vector<8x32xbf16>
        %c0_66 = arith.constant 0 : index
        %c0_67 = arith.constant 0 : index
        %104 = vector.load %arg7[%c0_66, %c0_67] : memref<32x32xbf16, #tpu.memory_space<vmem>>, vector<32x32xbf16>
        %cst_68 = arith.constant dense<0.000000e+00> : vector<8x32xf32>
        %105 = tpu.matmul %103, %104, %cst_68 {dimension_numbers = #tpu.dot_dimension_numbers<[1], [0], [0], [1], [0, 0, 1, 1], [], []>} : vector<8x32xbf16>, vector<32x32xbf16>, vector<8x32xf32> -> vector<8x32xf32>
        %c0_69 = arith.constant 0 : index
        %c0_70 = arith.constant 0 : index
        %106 = vector.load %arg8[%c0_69, %c0_70] : memref<1x32xf32, #tpu.memory_space<vmem>>, vector<1x32xf32>
        %107 = vector.broadcast %106 : vector<1x32xf32> to vector<8x32xf32>
        %108 = arith.addf %105, %107 : vector<8x32xf32>
        %c0_71 = arith.constant 0 : index
        %c0_72 = arith.constant 0 : index
        %109 = vector.load %arg9[%c0_71, %c0_72] : memref<32x32xbf16, #tpu.memory_space<vmem>>, vector<32x32xbf16>
        %cst_73 = arith.constant dense<0.000000e+00> : vector<8x32xf32>
        %110 = tpu.matmul %103, %109, %cst_73 {dimension_numbers = #tpu.dot_dimension_numbers<[1], [0], [0], [1], [0, 0, 1, 1], [], []>} : vector<8x32xbf16>, vector<32x32xbf16>, vector<8x32xf32> -> vector<8x32xf32>
        %c0_74 = arith.constant 0 : index
        %c0_75 = arith.constant 0 : index
        %111 = vector.load %arg10[%c0_74, %c0_75] : memref<1x32xf32, #tpu.memory_space<vmem>>, vector<1x32xf32>
        %112 = vector.broadcast %111 : vector<1x32xf32> to vector<8x32xf32>
        %113 = arith.addf %110, %112 : vector<8x32xf32>
        %114 = vector.shape_cast %108 : vector<8x32xf32> to vector<8x4x8xf32>
        %115 = tpu.transpose %114, [1, 0, 2] : vector<8x4x8xf32> -> vector<4x8x8xf32>
        %116 = arith.truncf %115 : vector<4x8x8xf32> to vector<4x8x8xbf16>
        %c0_76 = arith.constant 0 : index
        %c0_77 = arith.constant 0 : index
        %c0_78 = arith.constant 0 : index
        %c0_79 = arith.constant 0 : index
        %117 = vector.load %arg22[%c0_76, %c0_77, %c0_78, %c0_79] : memref<1x4x8x8xbf16, #tpu.memory_space<vmem>>, vector<1x4x8x8xbf16>
        %118 = vector.shape_cast %117 : vector<1x4x8x8xbf16> to vector<4x8x8xbf16>
        %119 = vector.shape_cast %116 : vector<4x8x8xbf16> to vector<1x4x8x8xbf16>
        tpu.vector_store %arg22[%c0_76, %c0_77, %c0_78, %c0_79], %119 {strides = array<i32>} : memref<1x4x8x8xbf16, #tpu.memory_space<vmem>>, vector<1x4x8x8xbf16>,
        %120 = vector.shape_cast %113 : vector<8x32xf32> to vector<8x4x8xf32>
        %121 = tpu.transpose %120, [1, 0, 2] : vector<8x4x8xf32> -> vector<4x8x8xf32>
        %122 = arith.truncf %121 : vector<4x8x8xf32> to vector<4x8x8xbf16>
        %c0_80 = arith.constant 0 : index
        %c0_81 = arith.constant 0 : index
        %c0_82 = arith.constant 0 : index
        %c0_83 = arith.constant 0 : index
        %123 = vector.load %arg23[%c0_80, %c0_81, %c0_82, %c0_83] : memref<1x4x8x8xbf16, #tpu.memory_space<vmem>>, vector<1x4x8x8xbf16>
        %124 = vector.shape_cast %123 : vector<1x4x8x8xbf16> to vector<4x8x8xbf16>
        %125 = vector.shape_cast %122 : vector<4x8x8xbf16> to vector<1x4x8x8xbf16>
        tpu.vector_store %arg23[%c0_80, %c0_81, %c0_82, %c0_83], %125 {strides = array<i32>} : memref<1x4x8x8xbf16, #tpu.memory_space<vmem>>, vector<1x4x8x8xbf16>,
      } else {
      }
      %c0_18 = arith.constant 0 : index
      %c0_19 = arith.constant 0 : index
      %c0_20 = arith.constant 0 : index
      %23 = vector.load %arg3[%c0_18, %c0_19, %c0_20] : memref<1x8x32xf32, #tpu.memory_space<vmem>>, vector<1x8x32xf32>
      %24 = vector.shape_cast %23 : vector<1x8x32xf32> to vector<8x32xf32>
      %25 = arith.truncf %24 : vector<8x32xf32> to vector<8x32xbf16>
      %c0_21 = arith.constant 0 : index
      %c0_22 = arith.constant 0 : index
      %26 = vector.load %arg5[%c0_21, %c0_22] : memref<32x32xbf16, #tpu.memory_space<vmem>>, vector<32x32xbf16>
      %cst_23 = arith.constant dense<0.000000e+00> : vector<8x32xf32>
      %27 = tpu.matmul %25, %26, %cst_23 {dimension_numbers = #tpu.dot_dimension_numbers<[1], [0], [0], [1], [0, 0, 1, 1], [], []>} : vector<8x32xbf16>, vector<32x32xbf16>, vector<8x32xf32> -> vector<8x32xf32>
      %c0_24 = arith.constant 0 : index
      %c0_25 = arith.constant 0 : index
      %28 = vector.load %arg6[%c0_24, %c0_25] : memref<1x32xf32, #tpu.memory_space<vmem>>, vector<1x32xf32>
      %29 = vector.broadcast %28 : vector<1x32xf32> to vector<8x32xf32>
      %30 = arith.addf %27, %29 : vector<8x32xf32>
      %31 = vector.shape_cast %30 : vector<8x32xf32> to vector<8x4x8xf32>
      %32 = tpu.transpose %31, [1, 0, 2] : vector<8x4x8xf32> -> vector<4x8x8xf32>
      %33 = arith.truncf %32 : vector<4x8x8xf32> to vector<4x8x8xbf16>
      %cst_26 = arith.constant 0xFF800000 : f32
      %34 = vector.broadcast %cst_26 : f32 to vector<4x8x1xf32>
      %cst_27 = arith.constant 0.000000e+00 : f32
      %35 = vector.broadcast %cst_27 : f32 to vector<4x8x1xf32>
      %cst_28 = arith.constant 0.000000e+00 : f32
      %36 = vector.broadcast %cst_28 : f32 to vector<4x8x8xf32>
      %c0_29 = arith.constant 0 : index
      %c0_30 = arith.constant 0 : index
      %c0_31 = arith.constant 0 : index
      %c0_32 = arith.constant 0 : index
      %37 = vector.load %arg22[%c0_29, %c0_30, %c0_31, %c0_32] : memref<1x4x8x8xbf16, #tpu.memory_space<vmem>>, vector<1x4x8x8xbf16>
      %38 = vector.shape_cast %37 : vector<1x4x8x8xbf16> to vector<4x8x8xbf16>
      %c0_33 = arith.constant 0 : index
      %c0_34 = arith.constant 0 : index
      %c0_35 = arith.constant 0 : index
      %c0_36 = arith.constant 0 : index
      %39 = vector.load %arg23[%c0_33, %c0_34, %c0_35, %c0_36] : memref<1x4x8x8xbf16, #tpu.memory_space<vmem>>, vector<1x4x8x8xbf16>
      %40 = vector.shape_cast %39 : vector<1x4x8x8xbf16> to vector<4x8x8xbf16>
      "tpu.trace_start"() <{level = 10 : i32, message = "hqd,hkd->hqk"}> : () -> ()
      %cst_37 = arith.constant dense<0.000000e+00> : vector<4x8x8xf32>
      %41 = tpu.matmul %33, %38, %cst_37 {dimension_numbers = #tpu.dot_dimension_numbers<[2], [2], [1], [1], [0, 0, 0, 1, 1, 1], [0], [0]>} : vector<4x8x8xbf16>, vector<4x8x8xbf16>, vector<4x8x8xf32> -> vector<4x8x8xf32>
      "tpu.trace_stop"() : () -> ()
      %cst_38 = arith.constant 0.353553385 : f32
      %42 = vector.broadcast %cst_38 : f32 to vector<4x8x8xf32>
      %43 = arith.mulf %41, %42 : vector<4x8x8xf32>
      %cst_39 = arith.constant dense<0xFF800000> : vector<4x8xf32>
      %44 = vector.multi_reduction <maximumf>, %43, %cst_39 [2] : vector<4x8x8xf32> to vector<4x8xf32>
      %45 = vector.shape_cast %44 : vector<4x8xf32> to vector<4x8x1xf32>
      %46 = arith.maximumf %34, %45 : vector<4x8x1xf32>
      %47 = arith.subf %34, %46 : vector<4x8x1xf32>
      %48 = math.exp %47 : vector<4x8x1xf32>
      %49 = vector.broadcast %46 : vector<4x8x1xf32> to vector<4x8x8xf32>
      %50 = arith.subf %43, %49 : vector<4x8x8xf32>
      %51 = math.exp %50 : vector<4x8x8xf32>
      %52 = arith.mulf %48, %35 : vector<4x8x1xf32>
      %cst_40 = arith.constant dense<0.000000e+00> : vector<4x8xf32>
      %53 = vector.multi_reduction <add>, %51, %cst_40 [2] : vector<4x8x8xf32> to vector<4x8xf32>
      %54 = vector.shape_cast %53 : vector<4x8xf32> to vector<4x8x1xf32>
      %55 = arith.addf %52, %54 : vector<4x8x1xf32>
      %56 = vector.broadcast %48 : vector<4x8x1xf32> to vector<4x8x8xf32>
      %57 = arith.mulf %56, %36 : vector<4x8x8xf32>
      %58 = arith.truncf %51 : vector<4x8x8xf32> to vector<4x8x8xbf16>
      "tpu.trace_start"() <{level = 10 : i32, message = "hqk,hkd->hqd"}> : () -> ()
      %cst_41 = arith.constant dense<0.000000e+00> : vector<4x8x8xf32>
      %59 = tpu.matmul %58, %40, %cst_41 {dimension_numbers = #tpu.dot_dimension_numbers<[2], [1], [1], [2], [0, 0, 0, 1, 1, 2], [0], [0]>} : vector<4x8x8xbf16>, vector<4x8x8xbf16>, vector<4x8x8xf32> -> vector<4x8x8xf32>
      "tpu.trace_stop"() : () -> ()
      %60 = arith.addf %57, %59 : vector<4x8x8xf32>
      %61 = tpu.reciprocal %55 : vector<4x8x1xf32> -> vector<4x8x1xf32>
      %62 = vector.broadcast %61 : vector<4x8x1xf32> to vector<4x8x8xf32>
      %63 = arith.mulf %60, %62 : vector<4x8x8xf32>
      %64 = tpu.transpose %63, [1, 0, 2] : vector<4x8x8xf32> -> vector<8x4x8xf32>
      %65 = vector.shape_cast %64 : vector<8x4x8xf32> to vector<8x32xf32>
      %66 = arith.truncf %65 : vector<8x32xf32> to vector<8x32xbf16>
      %c0_42 = arith.constant 0 : index
      %c0_43 = arith.constant 0 : index
      %67 = vector.load %arg11[%c0_42, %c0_43] : memref<32x32xbf16, #tpu.memory_space<vmem>>, vector<32x32xbf16>
      %cst_44 = arith.constant dense<0.000000e+00> : vector<8x32xf32>
      %68 = tpu.matmul %66, %67, %cst_44 {dimension_numbers = #tpu.dot_dimension_numbers<[1], [0], [0], [1], [0, 0, 1, 1], [], []>} : vector<8x32xbf16>, vector<32x32xbf16>, vector<8x32xf32> -> vector<8x32xf32>
      %c0_45 = arith.constant 0 : index
      %c0_46 = arith.constant 0 : index
      %69 = vector.load %arg12[%c0_45, %c0_46] : memref<1x32xf32, #tpu.memory_space<vmem>>, vector<1x32xf32>
      %70 = vector.broadcast %69 : vector<1x32xf32> to vector<8x32xf32>
      %71 = arith.addf %68, %70 : vector<8x32xf32>
      %72 = arith.addf %24, %71 : vector<8x32xf32>
      %c0_47 = arith.constant 0 : index
      %c0_48 = arith.constant 0 : index
      %73 = vector.load %arg13[%c0_47, %c0_48] : memref<1x32xf32, #tpu.memory_space<vmem>>, vector<1x32xf32>
      %c0_49 = arith.constant 0 : index
      %c0_50 = arith.constant 0 : index
      %74 = vector.load %arg14[%c0_49, %c0_50] : memref<1x32xf32, #tpu.memory_space<vmem>>, vector<1x32xf32>
      %cst_51 = arith.constant dense<0.000000e+00> : vector<8xf32>
      %75 = vector.multi_reduction <add>, %72, %cst_51 [1] : vector<8x32xf32> to vector<8xf32>
      %76 = vector.shape_cast %75 : vector<8xf32> to vector<8x1xf32>
      %cst_52 = arith.constant 3.200000e+01 : f32
      %77 = vector.broadcast %cst_52 : f32 to vector<8x1xf32>
      %78 = arith.divf %76, %77 : vector<8x1xf32>
      %79 = vector.broadcast %78 : vector<8x1xf32> to vector<8x32xf32>
      %80 = arith.subf %72, %79 : vector<8x32xf32>
      %81 = arith.mulf %80, %80 : vector<8x32xf32>
      %cst_53 = arith.constant dense<0.000000e+00> : vector<8xf32>
      %82 = vector.multi_reduction <add>, %81, %cst_53 [1] : vector<8x32xf32> to vector<8xf32>
      %83 = vector.shape_cast %82 : vector<8xf32> to vector<8x1xf32>
      %cst_54 = arith.constant 3.200000e+01 : f32
      %84 = vector.broadcast %cst_54 : f32 to vector<8x1xf32>
      %85 = arith.divf %83, %84 : vector<8x1xf32>
      %86 = vector.broadcast %78 : vector<8x1xf32> to vector<8x32xf32>
      %87 = arith.subf %72, %86 : vector<8x32xf32>
      %cst_55 = arith.constant 9.99999974E-6 : f32
      %88 = vector.broadcast %cst_55 : f32 to vector<8x1xf32>
      %89 = arith.addf %85, %88 : vector<8x1xf32>
      %90 = math.rsqrt %89 : vector<8x1xf32>
      %91 = vector.broadcast %90 : vector<8x1xf32> to vector<8x32xf32>
      %92 = arith.mulf %87, %91 : vector<8x32xf32>
      %93 = vector.broadcast %73 : vector<1x32xf32> to vector<8x32xf32>
      %94 = arith.mulf %92, %93 : vector<8x32xf32>
      %95 = vector.broadcast %74 : vector<1x32xf32> to vector<8x32xf32>
      %96 = arith.addf %94, %95 : vector<8x32xf32>
      %c0_56 = arith.constant 0 : index
      %c0_57 = arith.constant 0 : index
      %97 = vector.load %arg24[%c0_56, %c0_57] : memref<8x32xf32, #tpu.memory_space<vmem>>, vector<8x32xf32>
      tpu.vector_store %arg24[%c0_56, %c0_57], %96 {strides = array<i32>} : memref<8x32xf32, #tpu.memory_space<vmem>>, vector<8x32xf32>,
      %98 = arith.truncf %96 : vector<8x32xf32> to vector<8x32xbf16>
      %c0_58 = arith.constant 0 : index
      %c0_59 = arith.constant 0 : index
      %99 = vector.load %arg25[%c0_58, %c0_59] : memref<8x32xbf16, #tpu.memory_space<vmem>>, vector<8x32xbf16>
      tpu.vector_store %arg25[%c0_58, %c0_59], %98 {strides = array<i32>} : memref<8x32xbf16, #tpu.memory_space<vmem>>, vector<8x32xbf16>,
      %cst_60 = arith.constant 0.000000e+00 : f32
      %100 = vector.broadcast %cst_60 : f32 to vector<8x32xf32>
      %c0_61 = arith.constant 0 : index
      %c0_62 = arith.constant 0 : index
      %101 = vector.load %arg26[%c0_61, %c0_62] : memref<8x32xf32, #tpu.memory_space<vmem>>, vector<8x32xf32>
      tpu.vector_store %arg26[%c0_61, %c0_62], %100 {strides = array<i32>} : memref<8x32xf32, #tpu.memory_space<vmem>>, vector<8x32xf32>,
    } else {
    }
    %c0 = arith.constant 0 : index
    %c0_1 = arith.constant 0 : index
    %3 = vector.load %arg25[%c0, %c0_1] : memref<8x32xbf16, #tpu.memory_space<vmem>>, vector<8x32xbf16>
    %c0_2 = arith.constant 0 : index
    %c0_3 = arith.constant 0 : index
    %4 = vector.load %arg15[%c0_2, %c0_3] : memref<32x64xbf16, #tpu.memory_space<vmem>>, vector<32x64xbf16>
    %cst = arith.constant dense<0.000000e+00> : vector<8x64xf32>
    %5 = tpu.matmul %3, %4, %cst {dimension_numbers = #tpu.dot_dimension_numbers<[1], [0], [0], [1], [0, 0, 1, 1], [], []>} : vector<8x32xbf16>, vector<32x64xbf16>, vector<8x64xf32> -> vector<8x64xf32>
    %c0_4 = arith.constant 0 : index
    %c0_5 = arith.constant 0 : index
    %6 = vector.load %arg16[%c0_4, %c0_5] : memref<1x64xf32, #tpu.memory_space<vmem>>, vector<1x64xf32>
    %7 = vector.broadcast %6 : vector<1x64xf32> to vector<8x64xf32>
    %8 = arith.addf %5, %7 : vector<8x64xf32>
    %cst_6 = arith.constant 0.000000e+00 : f32
    %9 = vector.broadcast %cst_6 : f32 to vector<8x64xf32>
    %10 = arith.maximumf %8, %9 : vector<8x64xf32>
    %c0_7 = arith.constant 0 : index
    %c0_8 = arith.constant 0 : index
    %11 = vector.load %arg26[%c0_7, %c0_8] : memref<8x32xf32, #tpu.memory_space<vmem>>, vector<8x32xf32>
    %12 = arith.truncf %10 : vector<8x64xf32> to vector<8x64xbf16>
    %c0_9 = arith.constant 0 : index
    %c0_10 = arith.constant 0 : index
    %13 = vector.load %arg17[%c0_9, %c0_10] : memref<64x32xbf16, #tpu.memory_space<vmem>>, vector<64x32xbf16>
    %cst_11 = arith.constant dense<0.000000e+00> : vector<8x32xf32>
    %14 = tpu.matmul %12, %13, %cst_11 {dimension_numbers = #tpu.dot_dimension_numbers<[1], [0], [0], [1], [0, 0, 1, 1], [], []>} : vector<8x64xbf16>, vector<64x32xbf16>, vector<8x32xf32> -> vector<8x32xf32>
    %15 = arith.addf %11, %14 : vector<8x32xf32>
    %c0_12 = arith.constant 0 : index
    %c0_13 = arith.constant 0 : index
    %16 = vector.load %arg26[%c0_12, %c0_13] : memref<8x32xf32, #tpu.memory_space<vmem>>, vector<8x32xf32>
    tpu.vector_store %arg26[%c0_12, %c0_13], %15 {strides = array<i32>} : memref<8x32xf32, #tpu.memory_space<vmem>>, vector<8x32xf32>,
    %c0_i32_14 = arith.constant 0 : i32
    %17 = arith.cmpi eq, %arg2, %c0_i32_14 : i32
    %18 = arith.extui %17 : i1 to i32
    %c0_i32_15 = arith.constant 0 : i32
    %19 = arith.cmpi ne, %18, %c0_i32_15 : i32
    scf.if %19 {
      %c0_16 = arith.constant 0 : index
      %c0_17 = arith.constant 0 : index
      %20 = vector.load %arg26[%c0_16, %c0_17] : memref<8x32xf32, #tpu.memory_space<vmem>>, vector<8x32xf32>
      %c0_18 = arith.constant 0 : index
      %c0_19 = arith.constant 0 : index
      %21 = vector.load %arg18[%c0_18, %c0_19] : memref<1x32xf32, #tpu.memory_space<vmem>>, vector<1x32xf32>
      %22 = vector.broadcast %21 : vector<1x32xf32> to vector<8x32xf32>
      %23 = arith.addf %20, %22 : vector<8x32xf32>
      %c0_20 = arith.constant 0 : index
      %c0_21 = arith.constant 0 : index
      %24 = vector.load %arg24[%c0_20, %c0_21] : memref<8x32xf32, #tpu.memory_space<vmem>>, vector<8x32xf32>
      %25 = arith.addf %24, %23 : vector<8x32xf32>
      %c0_22 = arith.constant 0 : index
      %c0_23 = arith.constant 0 : index
      %26 = vector.load %arg19[%c0_22, %c0_23] : memref<1x32xf32, #tpu.memory_space<vmem>>, vector<1x32xf32>
      %c0_24 = arith.constant 0 : index
      %c0_25 = arith.constant 0 : index
      %27 = vector.load %arg20[%c0_24, %c0_25] : memref<1x32xf32, #tpu.memory_space<vmem>>, vector<1x32xf32>
      %cst_26 = arith.constant dense<0.000000e+00> : vector<8xf32>
      %28 = vector.multi_reduction <add>, %25, %cst_26 [1] : vector<8x32xf32> to vector<8xf32>
      %29 = vector.shape_cast %28 : vector<8xf32> to vector<8x1xf32>
      %cst_27 = arith.constant 3.200000e+01 : f32
      %30 = vector.broadcast %cst_27 : f32 to vector<8x1xf32>
      %31 = arith.divf %29, %30 : vector<8x1xf32>
      %32 = vector.broadcast %31 : vector<8x1xf32> to vector<8x32xf32>
      %33 = arith.subf %25, %32 : vector<8x32xf32>
      %34 = arith.mulf %33, %33 : vector<8x32xf32>
      %cst_28 = arith.constant dense<0.000000e+00> : vector<8xf32>
      %35 = vector.multi_reduction <add>, %34, %cst_28 [1] : vector<8x32xf32> to vector<8xf32>
      %36 = vector.shape_cast %35 : vector<8xf32> to vector<8x1xf32>
      %cst_29 = arith.constant 3.200000e+01 : f32
      %37 = vector.broadcast %cst_29 : f32 to vector<8x1xf32>
      %38 = arith.divf %36, %37 : vector<8x1xf32>
      %39 = vector.broadcast %31 : vector<8x1xf32> to vector<8x32xf32>
      %40 = arith.subf %25, %39 : vector<8x32xf32>
      %cst_30 = arith.constant 9.99999974E-6 : f32
      %41 = vector.broadcast %cst_30 : f32 to vector<8x1xf32>
      %42 = arith.addf %38, %41 : vector<8x1xf32>
      %43 = math.rsqrt %42 : vector<8x1xf32>
      %44 = vector.broadcast %43 : vector<8x1xf32> to vector<8x32xf32>
      %45 = arith.mulf %40, %44 : vector<8x32xf32>
      %46 = vector.broadcast %26 : vector<1x32xf32> to vector<8x32xf32>
      %47 = arith.mulf %45, %46 : vector<8x32xf32>
      %48 = vector.broadcast %27 : vector<1x32xf32> to vector<8x32xf32>
      %49 = arith.addf %47, %48 : vector<8x32xf32>
      %c0_31 = arith.constant 0 : index
      %c0_32 = arith.constant 0 : index
      %c0_33 = arith.constant 0 : index
      %50 = vector.load %arg21[%c0_31, %c0_32, %c0_33] : memref<1x8x32xf32, #tpu.memory_space<vmem>>, vector<1x8x32xf32>
      %51 = vector.shape_cast %50 : vector<1x8x32xf32> to vector<8x32xf32>
      %52 = vector.shape_cast %49 : vector<8x32xf32> to vector<1x8x32xf32>
      tpu.vector_store %arg21[%c0_31, %c0_32, %c0_33], %52 {strides = array<i32>} : memref<1x8x32xf32, #tpu.memory_space<vmem>>, vector<1x8x32xf32>,
    } else {
    }
    return
  }
  func.func @transform_0(%arg0: i32, %arg1: i32, %arg2: i32) -> (i32, i32, i32) {
    %c0_i32 = arith.constant 0 : i32
    %c0_i32_0 = arith.constant 0 : i32
    return %arg0, %arg1, %c0_i32 : i32, i32, i32
  }
  func.func @transform_1(%arg0: i32, %arg1: i32, %arg2: i32) -> (i32, i32, i32) {
    %c0_i32 = arith.constant 0 : i32
    %c0_i32_0 = arith.constant 0 : i32
    %c0_i32_1 = arith.constant 0 : i32
    return %arg0, %c0_i32, %c0_i32_0 : i32, i32, i32
  }
  func.func @transform_2(%arg0: i32, %arg1: i32, %arg2: i32) -> (i32, i32) {
    %c0_i32 = arith.constant 0 : i32
    %c0_i32_0 = arith.constant 0 : i32
    %c0_i32_1 = arith.constant 0 : i32
    return %c0_i32, %c0_i32_0 : i32, i32
  }
  func.func @transform_3(%arg0: i32, %arg1: i32, %arg2: i32) -> (i32, i32) {
    %c0_i32 = arith.constant 0 : i32
    %c0_i32_0 = arith.constant 0 : i32
    %c0_i32_1 = arith.constant 0 : i32
    return %c0_i32, %c0_i32_0 : i32, i32
  }
  func.func @transform_4(%arg0: i32, %arg1: i32, %arg2: i32) -> (i32, i32) {
    %c0_i32 = arith.constant 0 : i32
    %c0_i32_0 = arith.constant 0 : i32
    %c0_i32_1 = arith.constant 0 : i32
    return %c0_i32, %c0_i32_0 : i32, i32
  }
  func.func @transform_5(%arg0: i32, %arg1: i32, %arg2: i32) -> (i32, i32) {
    %c0_i32 = arith.constant 0 : i32
    %c0_i32_0 = arith.constant 0 : i32
    %c0_i32_1 = arith.constant 0 : i32
    return %c0_i32, %c0_i32_0 : i32, i32
  }
  func.func @transform_6(%arg0: i32, %arg1: i32, %arg2: i32) -> (i32, i32) {
    %c0_i32 = arith.constant 0 : i32
    %c0_i32_0 = arith.constant 0 : i32
    %c0_i32_1 = arith.constant 0 : i32
    return %c0_i32, %c0_i32_0 : i32, i32
  }
  func.func @transform_7(%arg0: i32, %arg1: i32, %arg2: i32) -> (i32, i32) {
    %c0_i32 = arith.constant 0 : i32
    %c0_i32_0 = arith.constant 0 : i32
    %c0_i32_1 = arith.constant 0 : i32
    return %c0_i32, %c0_i32_0 : i32, i32
  }
  func.func @transform_8(%arg0: i32, %arg1: i32, %arg2: i32) -> (i32, i32) {
    %c0_i32 = arith.constant 0 : i32
    %c0_i32_0 = arith.constant 0 : i32
    %c0_i32_1 = arith.constant 0 : i32
    return %c0_i32, %c0_i32_0 : i32, i32
  }
  func.func @transform_9(%arg0: i32, %arg1: i32, %arg2: i32) -> (i32, i32) {
    %c0_i32 = arith.constant 0 : i32
    %c0_i32_0 = arith.constant 0 : i32
    %c0_i32_1 = arith.constant 0 : i32
    return %c0_i32, %c0_i32_0 : i32, i32
  }
  func.func @transform_10(%arg0: i32, %arg1: i32, %arg2: i32) -> (i32, i32) {
    %c0_i32 = arith.constant 0 : i32
    %c0_i32_0 = arith.constant 0 : i32
    %c0_i32_1 = arith.constant 0 : i32
    return %c0_i32, %c0_i32_0 : i32, i32
  }
  func.func @transform_11(%arg0: i32, %arg1: i32, %arg2: i32) -> (i32, i32) {
    %c0_i32 = arith.constant 0 : i32
    %c0_i32_0 = arith.constant 0 : i32
    %c0_i32_1 = arith.constant 0 : i32
    return %c0_i32, %c0_i32_0 : i32, i32
  }
  func.func @transform_12(%arg0: i32, %arg1: i32, %arg2: i32) -> (i32, i32) {
    %c0_i32 = arith.constant 0 : i32
    %c0_i32_0 = arith.constant 0 : i32
    return %c0_i32, %arg2 : i32, i32
  }
  func.func @transform_13(%arg0: i32, %arg1: i32, %arg2: i32) -> (i32, i32) {
    %c0_i32 = arith.constant 0 : i32
    %c0_i32_0 = arith.constant 0 : i32
    return %c0_i32, %arg2 : i32, i32
  }
  func.func @transform_14(%arg0: i32, %arg1: i32, %arg2: i32) -> (i32, i32) {
    %c0_i32 = arith.constant 0 : i32
    %c0_i32_0 = arith.constant 0 : i32
    return %arg2, %c0_i32 : i32, i32
  }
  func.func @transform_15(%arg0: i32, %arg1: i32, %arg2: i32) -> (i32, i32) {
    %c0_i32 = arith.constant 0 : i32
    %c0_i32_0 = arith.constant 0 : i32
    %c0_i32_1 = arith.constant 0 : i32
    return %c0_i32, %c0_i32_0 : i32, i32
  }
  func.func @transform_16(%arg0: i32, %arg1: i32, %arg2: i32) -> (i32, i32) {
    %c0_i32 = arith.constant 0 : i32
    %c0_i32_0 = arith.constant 0 : i32
    %c0_i32_1 = arith.constant 0 : i32
    return %c0_i32, %c0_i32_0 : i32, i32
  }
  func.func @transform_17(%arg0: i32, %arg1: i32, %arg2: i32) -> (i32, i32) {
    %c0_i32 = arith.constant 0 : i32
    %c0_i32_0 = arith.constant 0 : i32
    %c0_i32_1 = arith.constant 0 : i32
    return %c0_i32, %c0_i32_0 : i32, i32
  }
  func.func @transform_18(%arg0: i32, %arg1: i32, %arg2: i32) -> (i32, i32, i32) {
    %c0_i32 = arith.constant 0 : i32
    %c0_i32_0 = arith.constant 0 : i32
    return %arg0, %arg1, %c0_i32 : i32, i32, i32
  }
}

</mosaic_0001>

<llo_original>
// kernel: tpu_custom_call.1
$region0: #{tpu_custom_call.1}
  #allocation0 [shape = 'u32[]', space=smem, size = 0x4, offset = 0x4, fixed_abs, tag = 'smem constant byte address 0x4 - core index']
  #allocation1 [shape = 'u32[72,128]{1,0:T(1,128)}', space=vmem, size = 0x9000, scoped, tag = 'internal scratch']
  #allocation2 [shape = 'bf16[1,4,8,8]{3,2,1,0:T(8,128)(2,1)}', space=vmem, size = 0x2000, scoped, tag = 'scratch operand']
  #allocation3 [shape = 'bf16[1,4,8,8]{3,2,1,0:T(8,128)(2,1)}', space=vmem, size = 0x2000, scoped, tag = 'scratch operand']
  #allocation4 [shape = 'f32[8,32]{1,0:T(8,128)}', space=vmem, size = 0x1000, scoped, tag = 'scratch operand']
  #allocation5 [shape = 'bf16[8,32]{1,0:T(8,128)(2,1)}', space=vmem, size = 0x800, scoped, tag = 'scratch operand']
  #allocation6 [shape = 'f32[8,32]{1,0:T(8,128)}', space=vmem, size = 0x1000, scoped, tag = 'scratch operand']
  %s0 = inlined_call_operand.vmem [shape: f32[2,8,32], index: 0, kind: input, shape index: {}]
  %s1 = inlined_call_operand.hbm [shape: bf16[2,8,32], index: 1, kind: input, shape index: {}]
  %s2 = inlined_call_operand.vmem [shape: bf16[32,32], index: 2, kind: input, shape index: {}]
  %s3 = inlined_call_operand.vmem [shape: f32[1,32], index: 3, kind: input, shape index: {}]
  %s4 = inlined_call_operand.vmem [shape: bf16[32,32], index: 4, kind: input, shape index: {}]
  %s5 = inlined_call_operand.vmem [shape: f32[1,32], index: 5, kind: input, shape index: {}]
  %s6 = inlined_call_operand.hbm [shape: bf16[32,32], index: 6, kind: input, shape index: {}]
  %s7 = inlined_call_operand.vmem [shape: f32[1,32], index: 7, kind: input, shape index: {}]
  %s8 = inlined_call_operand.hbm [shape: bf16[32,32], index: 8, kind: input, shape index: {}]
  %s9 = inlined_call_operand.vmem [shape: f32[1,32], index: 9, kind: input, shape index: {}]
  %s10 = inlined_call_operand.vmem [shape: f32[1,32], index: 10, kind: input, shape index: {}]
  %s11 = inlined_call_operand.vmem [shape: f32[1,32], index: 11, kind: input, shape index: {}]
  %s12 = inlined_call_operand.hbm [shape: bf16[32,64], index: 12, kind: input, shape index: {}]
  %s13 = inlined_call_operand.vmem [shape: f32[1,64], index: 13, kind: input, shape index: {}]
  %s14 = inlined_call_operand.vmem [shape: bf16[64,32], index: 14, kind: input, shape index: {}]
  %s15 = inlined_call_operand.vmem [shape: f32[1,32], index: 15, kind: input, shape index: {}]
  %s16 = inlined_call_operand.vmem [shape: f32[1,32], index: 16, kind: input, shape index: {}]
  %s17 = inlined_call_operand.vmem [shape: f32[1,32], index: 17, kind: input, shape index: {}]
  %s18 = inlined_call_operand.hbm [shape: f32[2,8,32], index: 18, kind: output, shape index: {}]
  %s19 = sld [smem:[#allocation0]]
  $region133: #{tpu_custom_call.1} parent=0
    _
  %s21 = ssub.s32 1, %s19
  %s22 = scalar_select 0, %s21, %s19
  $region1: #{tpu_custom_call.1} parent=0
    #allocation7 [shape = 'u8[4096]{0}', space=vmem, size = 0x1000, scoped, tag = 'input window, operand 1']
    #allocation8 [shape = 's32[2]{0}', space=sflag, size = 0x8, scoped, tag = 'scoped memory for tpu_custom_call.1']
    #allocation9 [shape = 's32[2]{0}', space=sflag, size = 0x8, scoped, tag = 'scoped memory for tpu_custom_call.1']
    #allocation10 [shape = 'u8[8192]{0}', space=vmem, size = 0x2000, scoped, tag = 'input window, operand 6, single buffered']
    #allocation11 [shape = 's32[1]{0}', space=sflag, size = 0x4, scoped, tag = 'scoped memory for tpu_custom_call.1']
    #allocation12 [shape = 'u8[8192]{0}', space=vmem, size = 0x2000, scoped, tag = 'input window, operand 8, single buffered']
    #allocation13 [shape = 'u8[8192]{0}', space=vmem, size = 0x2000, scoped, tag = 'input window, operand 12, single buffered']
    #allocation14 [shape = 's32[1]{0}', space=sflag, size = 0x4, scoped, tag = 'scoped memory for tpu_custom_call.1']
    #allocation15 [shape = 'u8[8192]{0}', space=vmem, size = 0x2000, scoped, tag = 'output window, operand 0']
    %23 = vsyncpa [#allocation8], 0
    %s24 = scalar_lea.sflag [#allocation8], 1
    %25 = vsyncpa %s24, 0
    %26 = vsyncpa [#allocation11], 0
    %27 = vsyncpa [#allocation14], 0
    %28 = vsyncpa [#allocation9], 0
    %s29 = scalar_lea.sflag [#allocation9], 1
    %30 = vsyncpa %s29, 0
    loop: start=0, step=1, limit=4
    $region2: #{tpu_custom_call.1} parent=1 // loop_pre_header
      _
    $region3: #{tpu_custom_call.1} parent=1 // loop_header
      %s32 = sphi 0, %s36
      %p33 = scmp.ge.s32.totalorder %s32, 4
      %s39 = sphi 0, %s58
      %s40 = sphi 0, %s54
      %s41 = sphi 0, %s50
      %s42 = sphi 0, %s39
      %s43 = sphi 0, %s40
      %s44 = sphi 0, %s41
      %s45 = sphi 0, %s42
      %s46 = sphi 0, %s43
      %s47 = sphi 0, %s44
      %s63 = sphi 0, %s65
      %s66 = sphi 0, %s63
      %s67 = sphi 0, %s66
      %s83 = sphi 0, %s67
      %s89 = sphi 0, %s91
      %s92 = sphi 0, %s89
      %s93 = sphi 0, %s92
      %s109 = sphi 0, %s93
      %s113 = sphi 0, %s113
      %s115 = sphi 0, %s113
      %s116 = sphi 0, %s115
      %s130 = sphi 0, %s116
      %s134 = sphi 0, %s134
      %s136 = sphi 0, %s134
      %s137 = sphi 0, %s136
      %s151 = sphi 0, %s137
      %s155 = sphi 0, %s155
      %s157 = sphi 0, %s155
      %s158 = sphi 0, %s157
      %s172 = sphi 0, %s158
      %s176 = sphi 0, %s176
      %s178 = sphi 0, %s176
      %s179 = sphi 0, %s178
      %s193 = sphi 0, %s179
      %s197 = sphi 0, %s197
      %s199 = sphi 0, %s197
      %s200 = sphi 0, %s199
      %s214 = sphi 0, %s200
      %s218 = sphi 0, %s218
      %s220 = sphi 0, %s218
      %s221 = sphi 0, %s220
      %s235 = sphi 0, %s221
      %s239 = sphi 0, %s239
      %s241 = sphi 0, %s239
      %s242 = sphi 0, %s241
      %s256 = sphi 0, %s242
      %s260 = sphi 0, %s260
      %s262 = sphi 0, %s260
      %s263 = sphi 0, %s262
      %s277 = sphi 0, %s263
      %s281 = sphi 0, %s281
      %s283 = sphi 0, %s281
      %s284 = sphi 0, %s283
      %s298 = sphi 0, %s284
      %s302 = sphi 0, %s302
      %s304 = sphi 0, %s302
      %s305 = sphi 0, %s304
      %s319 = sphi 0, %s305
      %s325 = sphi 0, %s327
      %s328 = sphi 0, %s325
      %s329 = sphi 0, %s328
      %s345 = sphi 0, %s329
      %s351 = sphi 0, %s353
      %s354 = sphi 0, %s351
      %s355 = sphi 0, %s354
      %s371 = sphi 0, %s355
      %s377 = sphi 0, %s379
      %s380 = sphi 0, %s377
      %s381 = sphi 0, %s380
      %s397 = sphi 0, %s381
      %s401 = sphi 0, %s401
      %s403 = sphi 0, %s401
      %s404 = sphi 0, %s403
      %s418 = sphi 0, %s404
      %s422 = sphi 0, %s422
      %s424 = sphi 0, %s422
      %s425 = sphi 0, %s424
      %s439 = sphi 0, %s425
      %s443 = sphi 0, %s443
      %s445 = sphi 0, %s443
      %s446 = sphi 0, %s445
      %s460 = sphi 0, %s446
      %s468 = sphi 0, %s470
      %s471 = sphi 0, %s468
      %s472 = sphi 0, %s471
      %s488 = sphi 0, %s472
    $region4: #{tpu_custom_call.1} parent=1 // loop_header_branch
      %35 = sbr.rel (%p33) target = $region8
    $region5: #{tpu_custom_call.1} parent=1 // loop_body
      %s37 = ssub.s32 %s32, 1
      %s38 = ssub.s32 %s32, 2
      %s48 = sadd.s32 1, %s41
      %p49 = scmp.ge.s32.totalorder %s48, 1
      %s50 = scalar_select %p49, 0, %s48
      %s51 = sadd.s32 1, %s40
      %s52 = scalar_select %p49, %s51, %s40
      %p53 = scmp.ge.s32.totalorder %s52, 1
      %s54 = scalar_select %p53, 0, %s52
      %s55 = sadd.s32 1, %s39
      %s56 = scalar_select %p53, %s55, %s39
      %p57 = scmp.ge.s32.totalorder %s56, 2
      %s58 = scalar_select %p57, 0, %s56
      %s59 = ssub.s32 %s39, %s58
      %s60 = ssub.s32 %s40, %s54
      %s61 = sor.u32 %s59, %s60
      %p62 = scmp.eq.s32.totalorder %s61, 0
      %s64 = sadd.s32 %s63, 1
      %s65 = scalar_select %p62, %s63, %s64
      %p68 = pneg %p62
      %p69 = scmp.eq.s32.totalorder %s32, 1
      %p70 = por %p68, %p69
      %p71 = scmp.ne.s32.totalorder %s63, %s66
      %p72 = scmp.eq.s32.totalorder %s32, 0
      %p73 = por %p71, %p72
      %p74 = scmp.ne.s32.totalorder %s63, %s66
      %p75 = scmp.eq.s32.totalorder %s37, 1
      %p76 = por %p74, %p75
      %p77 = scmp.ne.s32.totalorder %s66, %s67
      %p78 = scmp.eq.s32.totalorder %s37, 0
      %p79 = por %p77, %p78
      %p80 = scmp.ne.s32.totalorder %s66, %s67
      %p81 = scmp.eq.s32.totalorder %s38, 1
      %p82 = por %p80, %p81
      %p84 = scmp.ne.s32.totalorder %s67, %s83
      %p85 = scmp.eq.s32.totalorder %s38, 0
      %p86 = por %p84, %p85
      %s87 = ssub.s32 %s39, %s58
      %p88 = scmp.eq.s32.totalorder %s87, 0
      %s90 = sadd.s32 %s89, 1
      %s91 = scalar_select %p88, %s89, %s90
      %p94 = pneg %p88
      %p95 = scmp.eq.s32.totalorder %s32, 1
      %p96 = por %p94, %p95
      %p97 = scmp.ne.s32.totalorder %s89, %s92
      %p98 = scmp.eq.s32.totalorder %s32, 0
      %p99 = por %p97, %p98
      %p100 = scmp.ne.s32.totalorder %s89, %s92
      %p101 = scmp.eq.s32.totalorder %s37, 1
      %p102 = por %p100, %p101
      %p103 = scmp.ne.s32.totalorder %s92, %s93
      %p104 = scmp.eq.s32.totalorder %s37, 0
      %p105 = por %p103, %p104
      %p106 = scmp.ne.s32.totalorder %s92, %s93
      %p107 = scmp.eq.s32.totalorder %s38, 1
      %p108 = por %p106, %p107
      %p110 = scmp.ne.s32.totalorder %s93, %s109
      %p111 = scmp.eq.s32.totalorder %s38, 0
      %p112 = por %p110, %p111
      %s114 = sadd.s32 %s113, 1
      %p117 = scmp.eq.s32.totalorder %s32, 1
      %p118 = scmp.ne.s32.totalorder %s113, %s115
      %p119 = scmp.eq.s32.totalorder %s32, 0
      %p120 = por %p118, %p119
      %p121 = scmp.ne.s32.totalorder %s113, %s115
      %p122 = scmp.eq.s32.totalorder %s37, 1
      %p123 = por %p121, %p122
      %p124 = scmp.ne.s32.totalorder %s115, %s116
      %p125 = scmp.eq.s32.totalorder %s37, 0
      %p126 = por %p124, %p125
      %p127 = scmp.ne.s32.totalorder %s115, %s116
      %p128 = scmp.eq.s32.totalorder %s38, 1
      %p129 = por %p127, %p128
      %p131 = scmp.ne.s32.totalorder %s116, %s130
      %p132 = scmp.eq.s32.totalorder %s38, 0
      %p133 = por %p131, %p132
      %s135 = sadd.s32 %s134, 1
      %p138 = scmp.eq.s32.totalorder %s32, 1
      %p139 = scmp.ne.s32.totalorder %s134, %s136
      %p140 = scmp.eq.s32.totalorder %s32, 0
      %p141 = por %p139, %p140
      %p142 = scmp.ne.s32.totalorder %s134, %s136
      %p143 = scmp.eq.s32.totalorder %s37, 1
      %p144 = por %p142, %p143
      %p145 = scmp.ne.s32.totalorder %s136, %s137
      %p146 = scmp.eq.s32.totalorder %s37, 0
      %p147 = por %p145, %p146
      %p148 = scmp.ne.s32.totalorder %s136, %s137
      %p149 = scmp.eq.s32.totalorder %s38, 1
      %p150 = por %p148, %p149
      %p152 = scmp.ne.s32.totalorder %s137, %s151
      %p153 = scmp.eq.s32.totalorder %s38, 0
      %p154 = por %p152, %p153
      %s156 = sadd.s32 %s155, 1
      %p159 = scmp.eq.s32.totalorder %s32, 1
      %p160 = scmp.ne.s32.totalorder %s155, %s157
      %p161 = scmp.eq.s32.totalorder %s32, 0
      %p162 = por %p160, %p161
      %p163 = scmp.ne.s32.totalorder %s155, %s157
      %p164 = scmp.eq.s32.totalorder %s37, 1
      %p165 = por %p163, %p164
      %p166 = scmp.ne.s32.totalorder %s157, %s158
      %p167 = scmp.eq.s32.totalorder %s37, 0
      %p168 = por %p166, %p167
      %p169 = scmp.ne.s32.totalorder %s157, %s158
      %p170 = scmp.eq.s32.totalorder %s38, 1
      %p171 = por %p169, %p170
      %p173 = scmp.ne.s32.totalorder %s158, %s172
      %p174 = scmp.eq.s32.totalorder %s38, 0
      %p175 = por %p173, %p174
      %s177 = sadd.s32 %s176, 1
      %p180 = scmp.eq.s32.totalorder %s32, 1
      %p181 = scmp.ne.s32.totalorder %s176, %s178
      %p182 = scmp.eq.s32.totalorder %s32, 0
      %p183 = por %p181, %p182
      %p184 = scmp.ne.s32.totalorder %s176, %s178
      %p185 = scmp.eq.s32.totalorder %s37, 1
      %p186 = por %p184, %p185
      %p187 = scmp.ne.s32.totalorder %s178, %s179
      %p188 = scmp.eq.s32.totalorder %s37, 0
      %p189 = por %p187, %p188
      %p190 = scmp.ne.s32.totalorder %s178, %s179
      %p191 = scmp.eq.s32.totalorder %s38, 1
      %p192 = por %p190, %p191
      %p194 = scmp.ne.s32.totalorder %s179, %s193
      %p195 = scmp.eq.s32.totalorder %s38, 0
      %p196 = por %p194, %p195
      %s198 = sadd.s32 %s197, 1
      %p201 = scmp.eq.s32.totalorder %s32, 1
      %p202 = scmp.ne.s32.totalorder %s197, %s199
      %p203 = scmp.eq.s32.totalorder %s32, 0
      %p204 = por %p202, %p203
      %p205 = scmp.ne.s32.totalorder %s197, %s199
      %p206 = scmp.eq.s32.totalorder %s37, 1
      %p207 = por %p205, %p206
      %p208 = scmp.ne.s32.totalorder %s199, %s200
      %p209 = scmp.eq.s32.totalorder %s37, 0
      %p210 = por %p208, %p209
      %p211 = scmp.ne.s32.totalorder %s199, %s200
      %p212 = scmp.eq.s32.totalorder %s38, 1
      %p213 = por %p211, %p212
      %p215 = scmp.ne.s32.totalorder %s200, %s214
      %p216 = scmp.eq.s32.totalorder %s38, 0
      %p217 = por %p215, %p216
      %s219 = sadd.s32 %s218, 1
      %p222 = scmp.eq.s32.totalorder %s32, 1
      %p223 = scmp.ne.s32.totalorder %s218, %s220
      %p224 = scmp.eq.s32.totalorder %s32, 0
      %p225 = por %p223, %p224
      %p226 = scmp.ne.s32.totalorder %s218, %s220
      %p227 = scmp.eq.s32.totalorder %s37, 1
      %p228 = por %p226, %p227
      %p229 = scmp.ne.s32.totalorder %s220, %s221
      %p230 = scmp.eq.s32.totalorder %s37, 0
      %p231 = por %p229, %p230
      %p232 = scmp.ne.s32.totalorder %s220, %s221
      %p233 = scmp.eq.s32.totalorder %s38, 1
      %p234 = por %p232, %p233
      %p236 = scmp.ne.s32.totalorder %s221, %s235
      %p237 = scmp.eq.s32.totalorder %s38, 0
      %p238 = por %p236, %p237
      %s240 = sadd.s32 %s239, 1
      %p243 = scmp.eq.s32.totalorder %s32, 1
      %p244 = scmp.ne.s32.totalorder %s239, %s241
      %p245 = scmp.eq.s32.totalorder %s32, 0
      %p246 = por %p244, %p245
      %p247 = scmp.ne.s32.totalorder %s239, %s241
      %p248 = scmp.eq.s32.totalorder %s37, 1
      %p249 = por %p247, %p248
      %p250 = scmp.ne.s32.totalorder %s241, %s242
      %p251 = scmp.eq.s32.totalorder %s37, 0
      %p252 = por %p250, %p251
      %p253 = scmp.ne.s32.totalorder %s241, %s242
      %p254 = scmp.eq.s32.totalorder %s38, 1
      %p255 = por %p253, %p254
      %p257 = scmp.ne.s32.totalorder %s242, %s256
      %p258 = scmp.eq.s32.totalorder %s38, 0
      %p259 = por %p257, %p258
      %s261 = sadd.s32 %s260, 1
      %p264 = scmp.eq.s32.totalorder %s32, 1
      %p265 = scmp.ne.s32.totalorder %s260, %s262
      %p266 = scmp.eq.s32.totalorder %s32, 0
      %p267 = por %p265, %p266
      %p268 = scmp.ne.s32.totalorder %s260, %s262
      %p269 = scmp.eq.s32.totalorder %s37, 1
      %p270 = por %p268, %p269
      %p271 = scmp.ne.s32.totalorder %s262, %s263
      %p272 = scmp.eq.s32.totalorder %s37, 0
      %p273 = por %p271, %p272
      %p274 = scmp.ne.s32.totalorder %s262, %s263
      %p275 = scmp.eq.s32.totalorder %s38, 1
      %p276 = por %p274, %p275
      %p278 = scmp.ne.s32.totalorder %s263, %s277
      %p279 = scmp.eq.s32.totalorder %s38, 0
      %p280 = por %p278, %p279
      %s282 = sadd.s32 %s281, 1
      %p285 = scmp.eq.s32.totalorder %s32, 1
      %p286 = scmp.ne.s32.totalorder %s281, %s283
      %p287 = scmp.eq.s32.totalorder %s32, 0
      %p288 = por %p286, %p287
      %p289 = scmp.ne.s32.totalorder %s281, %s283
      %p290 = scmp.eq.s32.totalorder %s37, 1
      %p291 = por %p289, %p290
      %p292 = scmp.ne.s32.totalorder %s283, %s284
      %p293 = scmp.eq.s32.totalorder %s37, 0
      %p294 = por %p292, %p293
      %p295 = scmp.ne.s32.totalorder %s283, %s284
      %p296 = scmp.eq.s32.totalorder %s38, 1
      %p297 = por %p295, %p296
      %p299 = scmp.ne.s32.totalorder %s284, %s298
      %p300 = scmp.eq.s32.totalorder %s38, 0
      %p301 = por %p299, %p300
      %s303 = sadd.s32 %s302, 1
      %p306 = scmp.eq.s32.totalorder %s32, 1
      %p307 = scmp.ne.s32.totalorder %s302, %s304
      %p308 = scmp.eq.s32.totalorder %s32, 0
      %p309 = por %p307, %p308
      %p310 = scmp.ne.s32.totalorder %s302, %s304
      %p311 = scmp.eq.s32.totalorder %s37, 1
      %p312 = por %p310, %p311
      %p313 = scmp.ne.s32.totalorder %s304, %s305
      %p314 = scmp.eq.s32.totalorder %s37, 0
      %p315 = por %p313, %p314
      %p316 = scmp.ne.s32.totalorder %s304, %s305
      %p317 = scmp.eq.s32.totalorder %s38, 1
      %p318 = por %p316, %p317
      %p320 = scmp.ne.s32.totalorder %s305, %s319
      %p321 = scmp.eq.s32.totalorder %s38, 0
      %p322 = por %p320, %p321
      %s323 = ssub.s32 %s41, %s50
      %p324 = scmp.eq.s32.totalorder %s323, 0
      %s326 = sadd.s32 %s325, 1
      %s327 = scalar_select %p324, %s325, %s326
      %p330 = pneg %p324
      %p331 = scmp.eq.s32.totalorder %s32, 1
      %p332 = por %p330, %p331
      %p333 = scmp.ne.s32.totalorder %s325, %s328
      %p334 = scmp.eq.s32.totalorder %s32, 0
      %p335 = por %p333, %p334
      %p336 = scmp.ne.s32.totalorder %s325, %s328
      %p337 = scmp.eq.s32.totalorder %s37, 1
      %p338 = por %p336, %p337
      %p339 = scmp.ne.s32.totalorder %s328, %s329
      %p340 = scmp.eq.s32.totalorder %s37, 0
      %p341 = por %p339, %p340
      %p342 = scmp.ne.s32.totalorder %s328, %s329
      %p343 = scmp.eq.s32.totalorder %s38, 1
      %p344 = por %p342, %p343
      %p346 = scmp.ne.s32.totalorder %s329, %s345
      %p347 = scmp.eq.s32.totalorder %s38, 0
      %p348 = por %p346, %p347
      %s349 = ssub.s32 %s41, %s50
      %p350 = scmp.eq.s32.totalorder %s349, 0
      %s352 = sadd.s32 %s351, 1
      %s353 = scalar_select %p350, %s351, %s352
      %p356 = pneg %p350
      %p357 = scmp.eq.s32.totalorder %s32, 1
      %p358 = por %p356, %p357
      %p359 = scmp.ne.s32.totalorder %s351, %s354
      %p360 = scmp.eq.s32.totalorder %s32, 0
      %p361 = por %p359, %p360
      %p362 = scmp.ne.s32.totalorder %s351, %s354
      %p363 = scmp.eq.s32.totalorder %s37, 1
      %p364 = por %p362, %p363
      %p365 = scmp.ne.s32.totalorder %s354, %s355
      %p366 = scmp.eq.s32.totalorder %s37, 0
      %p367 = por %p365, %p366
      %p368 = scmp.ne.s32.totalorder %s354, %s355
      %p369 = scmp.eq.s32.totalorder %s38, 1
      %p370 = por %p368, %p369
      %p372 = scmp.ne.s32.totalorder %s355, %s371
      %p373 = scmp.eq.s32.totalorder %s38, 0
      %p374 = por %p372, %p373
      %s375 = ssub.s32 %s41, %s50
      %p376 = scmp.eq.s32.totalorder %s375, 0
      %s378 = sadd.s32 %s377, 1
      %s379 = scalar_select %p376, %s377, %s378
      %p382 = pneg %p376
      %p383 = scmp.eq.s32.totalorder %s32, 1
      %p384 = por %p382, %p383
      %p385 = scmp.ne.s32.totalorder %s377, %s380
      %p386 = scmp.eq.s32.totalorder %s32, 0
      %p387 = por %p385, %p386
      %p388 = scmp.ne.s32.totalorder %s377, %s380
      %p389 = scmp.eq.s32.totalorder %s37, 1
      %p390 = por %p388, %p389
      %p391 = scmp.ne.s32.totalorder %s380, %s381
      %p392 = scmp.eq.s32.totalorder %s37, 0
      %p393 = por %p391, %p392
      %p394 = scmp.ne.s32.totalorder %s380, %s381
      %p395 = scmp.eq.s32.totalorder %s38, 1
      %p396 = por %p394, %p395
      %p398 = scmp.ne.s32.totalorder %s381, %s397
      %p399 = scmp.eq.s32.totalorder %s38, 0
      %p400 = por %p398, %p399
      %s402 = sadd.s32 %s401, 1
      %p405 = scmp.eq.s32.totalorder %s32, 1
      %p406 = scmp.ne.s32.totalorder %s401, %s403
      %p407 = scmp.eq.s32.totalorder %s32, 0
      %p408 = por %p406, %p407
      %p409 = scmp.ne.s32.totalorder %s401, %s403
      %p410 = scmp.eq.s32.totalorder %s37, 1
      %p411 = por %p409, %p410
      %p412 = scmp.ne.s32.totalorder %s403, %s404
      %p413 = scmp.eq.s32.totalorder %s37, 0
      %p414 = por %p412, %p413
      %p415 = scmp.ne.s32.totalorder %s403, %s404
      %p416 = scmp.eq.s32.totalorder %s38, 1
      %p417 = por %p415, %p416
      %p419 = scmp.ne.s32.totalorder %s404, %s418
      %p420 = scmp.eq.s32.totalorder %s38, 0
      %p421 = por %p419, %p420
      %s423 = sadd.s32 %s422, 1
      %p426 = scmp.eq.s32.totalorder %s32, 1
      %p427 = scmp.ne.s32.totalorder %s422, %s424
      %p428 = scmp.eq.s32.totalorder %s32, 0
      %p429 = por %p427, %p428
      %p430 = scmp.ne.s32.totalorder %s422, %s424
      %p431 = scmp.eq.s32.totalorder %s37, 1
      %p432 = por %p430, %p431
      %p433 = scmp.ne.s32.totalorder %s424, %s425
      %p434 = scmp.eq.s32.totalorder %s37, 0
      %p435 = por %p433, %p434
      %p436 = scmp.ne.s32.totalorder %s424, %s425
      %p437 = scmp.eq.s32.totalorder %s38, 1
      %p438 = por %p436, %p437
      %p440 = scmp.ne.s32.totalorder %s425, %s439
      %p441 = scmp.eq.s32.totalorder %s38, 0
      %p442 = por %p440, %p441
      %s444 = sadd.s32 %s443, 1
      %p447 = scmp.eq.s32.totalorder %s32, 1
      %p448 = scmp.ne.s32.totalorder %s443, %s445
      %p449 = scmp.eq.s32.totalorder %s32, 0
      %p450 = por %p448, %p449
      %p451 = scmp.ne.s32.totalorder %s443, %s445
      %p452 = scmp.eq.s32.totalorder %s37, 1
      %p453 = por %p451, %p452
      %p454 = scmp.ne.s32.totalorder %s445, %s446
      %p455 = scmp.eq.s32.totalorder %s37, 0
      %p456 = por %p454, %p455
      %p457 = scmp.ne.s32.totalorder %s445, %s446
      %p458 = scmp.eq.s32.totalorder %s38, 1
      %p459 = por %p457, %p458
      %p461 = scmp.ne.s32.totalorder %s446, %s460
      %p462 = scmp.eq.s32.totalorder %s38, 0
      %p463 = por %p461, %p462
      %s464 = ssub.s32 %s39, %s58
      %s465 = ssub.s32 %s40, %s54
      %s466 = sor.u32 %s464, %s465
      %p467 = scmp.eq.s32.totalorder %s466, 0
      %s469 = sadd.s32 %s468, 1
      %s470 = scalar_select %p467, %s468, %s469
      %p473 = pneg %p467
      %p474 = scmp.eq.s32.totalorder %s32, 1
      %p475 = por %p473, %p474
      %p476 = scmp.ne.s32.totalorder %s468, %s471
      %p477 = scmp.eq.s32.totalorder %s32, 0
      %p478 = por %p476, %p477
      %p479 = scmp.ne.s32.totalorder %s468, %s471
      %p480 = scmp.eq.s32.totalorder %s37, 1
      %p481 = por %p479, %p480
      %p482 = scmp.ne.s32.totalorder %s471, %s472
      %p483 = scmp.eq.s32.totalorder %s37, 0
      %p484 = por %p482, %p483
      %p485 = scmp.ne.s32.totalorder %s471, %s472
      %p486 = scmp.eq.s32.totalorder %s38, 1
      %p487 = por %p485, %p486
      %p489 = scmp.ne.s32.totalorder %s472, %s488
      %p490 = scmp.eq.s32.totalorder %s38, 0
      %p491 = por %p489, %p490
      %p492 = scmp.le.s32.totalorder 1, %s32
      %p493 = scmp.lt.s32.totalorder %s32, 3
      %p494 = pnand %p492, %p493
      %p495 = pneg %p494
      // Predicated region
      $region9: #{tpu_custom_call.1} parent=5 // pred_check
        _
      $region10: #{tpu_custom_call.1} parent=5 // pred_check_branch
        %497 = sbr.rel (%p494) target = $region12
      $region11: #{tpu_custom_call.1} parent=5 // pred_region
        %s498 = ssub.s32 %s32, 1
        // Predicated region
        $region13: #{tpu_custom_call.1} parent=11 // pred_check
          %p499 = pneg %p126
        $region14: #{tpu_custom_call.1} parent=11 // pred_check_branch
          %501 = sbr.rel (%p499) target = $region16
        $region15: #{tpu_custom_call.1} parent=11 // pred_region
          _
        $region16: #{tpu_custom_call.1} parent=11 // pred_fallthru
          _
        // Predicated region
        $region17: #{tpu_custom_call.1} parent=11 // pred_check
          %p502 = pneg %p147
        $region18: #{tpu_custom_call.1} parent=11 // pred_check_branch
          %504 = sbr.rel (%p502) target = $region20
        $region19: #{tpu_custom_call.1} parent=11 // pred_region
          _
        $region20: #{tpu_custom_call.1} parent=11 // pred_fallthru
          _
        // Predicated region
        $region21: #{tpu_custom_call.1} parent=11 // pred_check
          %p505 = pneg %p168
        $region22: #{tpu_custom_call.1} parent=11 // pred_check_branch
          %507 = sbr.rel (%p505) target = $region24
        $region23: #{tpu_custom_call.1} parent=11 // pred_region
          _
        $region24: #{tpu_custom_call.1} parent=11 // pred_fallthru
          _
        // Predicated region
        $region25: #{tpu_custom_call.1} parent=11 // pred_check
          %p508 = pneg %p189
        $region26: #{tpu_custom_call.1} parent=11 // pred_check_branch
          %510 = sbr.rel (%p508) target = $region28
        $region27: #{tpu_custom_call.1} parent=11 // pred_region
          _
        $region28: #{tpu_custom_call.1} parent=11 // pred_fallthru
          _
        // Predicated region
        $region29: #{tpu_custom_call.1} parent=11 // pred_check
          %p511 = pneg %p210
        $region30: #{tpu_custom_call.1} parent=11 // pred_check_branch
          %513 = sbr.rel (%p511) target = $region32
        $region31: #{tpu_custom_call.1} parent=11 // pred_region
          %515 = vsyncadd [#allocation11], 0
          %s516 = sshll.u32 %s6, 4
          %s517 = int_to_ptr.hbm [resolvable:$true] %s516
          %s518 = sshll.u32 [#allocation10], 4
          %s519 = int_to_ptr.vmem [resolvable:$true] %s518
          %524 = dma.hbm_to_vmem [thread:$0]  %s517, 256, %s519, [#allocation11], 64, 64, 4
        $region32: #{tpu_custom_call.1} parent=11 // pred_fallthru
          _
        // Predicated region
        $region33: #{tpu_custom_call.1} parent=11 // pred_check
          %p525 = pneg %p231
        $region34: #{tpu_custom_call.1} parent=11 // pred_check_branch
          %527 = sbr.rel (%p525) target = $region36
        $region35: #{tpu_custom_call.1} parent=11 // pred_region
          _
        $region36: #{tpu_custom_call.1} parent=11 // pred_fallthru
          _
        // Predicated region
        $region37: #{tpu_custom_call.1} parent=11 // pred_check
          %p528 = pneg %p252
        $region38: #{tpu_custom_call.1} parent=11 // pred_check_branch
          %530 = sbr.rel (%p528) target = $region40
        $region39: #{tpu_custom_call.1} parent=11 // pred_region
          %532 = vsyncadd [#allocation11], 0
          %s533 = sshll.u32 %s8, 4
          %s534 = int_to_ptr.hbm [resolvable:$true] %s533
          %s535 = sshll.u32 [#allocation12], 4
          %s536 = int_to_ptr.vmem [resolvable:$true] %s535
          %541 = dma.hbm_to_vmem [thread:$0]  %s534, 256, %s536, [#allocation11], 64, 64, 4
        $region40: #{tpu_custom_call.1} parent=11 // pred_fallthru
          _
        // Predicated region
        $region41: #{tpu_custom_call.1} parent=11 // pred_check
          %p542 = pneg %p273
        $region42: #{tpu_custom_call.1} parent=11 // pred_check_branch
          %544 = sbr.rel (%p542) target = $region44
        $region43: #{tpu_custom_call.1} parent=11 // pred_region
          _
        $region44: #{tpu_custom_call.1} parent=11 // pred_fallthru
          _
        // Predicated region
        $region45: #{tpu_custom_call.1} parent=11 // pred_check
          %p545 = pneg %p294
        $region46: #{tpu_custom_call.1} parent=11 // pred_check_branch
          %547 = sbr.rel (%p545) target = $region48
        $region47: #{tpu_custom_call.1} parent=11 // pred_region
          _
        $region48: #{tpu_custom_call.1} parent=11 // pred_fallthru
          _
        // Predicated region
        $region49: #{tpu_custom_call.1} parent=11 // pred_check
          %p548 = pneg %p315
        $region50: #{tpu_custom_call.1} parent=11 // pred_check_branch
          %550 = sbr.rel (%p548) target = $region52
        $region51: #{tpu_custom_call.1} parent=11 // pred_region
          _
        $region52: #{tpu_custom_call.1} parent=11 // pred_fallthru
          _
        // Predicated region
        $region53: #{tpu_custom_call.1} parent=11 // pred_check
          %p551 = pneg %p341
        $region54: #{tpu_custom_call.1} parent=11 // pred_check_branch
          %553 = sbr.rel (%p551) target = $region56
        $region55: #{tpu_custom_call.1} parent=11 // pred_region
          %555 = vsyncadd [#allocation14], 0
          %s556 = smul.addr %s44, 4
          %s557 = scalar_lea.hbm %s12, %s556
          %s558 = sshll.u32 %s557, 4
          %s559 = int_to_ptr.hbm [resolvable:$true] %s558
          %s560 = sshll.u32 [#allocation13], 4
          %s561 = int_to_ptr.vmem [resolvable:$true] %s560
          %566 = dma.hbm_to_vmem [thread:$0]  %s559, 256, %s561, [#allocation14], 64, 64, 4
        $region56: #{tpu_custom_call.1} parent=11 // pred_fallthru
          _
        // Predicated region
        $region57: #{tpu_custom_call.1} parent=11 // pred_check
          %p567 = pneg %p367
        $region58: #{tpu_custom_call.1} parent=11 // pred_check_branch
          %569 = sbr.rel (%p567) target = $region60
        $region59: #{tpu_custom_call.1} parent=11 // pred_region
          %p570 = scmp.lt.s32.totalorder %s44, 0
          %s571 = scalar_select %p570, %s44, 0
          %s572 = scalar_lea.vmem %s13, %s571
        $region60: #{tpu_custom_call.1} parent=11 // pred_fallthru
          _
        // Predicated region
        $region61: #{tpu_custom_call.1} parent=11 // pred_check
          %p573 = pneg %p393
        $region62: #{tpu_custom_call.1} parent=11 // pred_check_branch
          %575 = sbr.rel (%p573) target = $region64
        $region63: #{tpu_custom_call.1} parent=11 // pred_region
          %s576 = smul.u32 8, %s44
          %p577 = scmp.lt.s32.totalorder %s576, 7
          %s578 = scalar_select %p577, %s576, 7
          %s579 = smul.addr %s578, 4
          %s580 = scalar_lea.vmem %s14, %s579
          %s581 = smul.u32 8, %s44
        $region64: #{tpu_custom_call.1} parent=11 // pred_fallthru
          _
        // Predicated region
        $region65: #{tpu_custom_call.1} parent=11 // pred_check
          %p582 = pneg %p414
        $region66: #{tpu_custom_call.1} parent=11 // pred_check_branch
          %584 = sbr.rel (%p582) target = $region68
        $region67: #{tpu_custom_call.1} parent=11 // pred_region
          _
        $region68: #{tpu_custom_call.1} parent=11 // pred_fallthru
          _
        // Predicated region
        $region69: #{tpu_custom_call.1} parent=11 // pred_check
          %p585 = pneg %p435
        $region70: #{tpu_custom_call.1} parent=11 // pred_check_branch
          %587 = sbr.rel (%p585) target = $region72
        $region71: #{tpu_custom_call.1} parent=11 // pred_region
          _
        $region72: #{tpu_custom_call.1} parent=11 // pred_fallthru
          _
        // Predicated region
        $region73: #{tpu_custom_call.1} parent=11 // pred_check
          %p588 = pneg %p456
        $region74: #{tpu_custom_call.1} parent=11 // pred_check_branch
          %590 = sbr.rel (%p588) target = $region76
        $region75: #{tpu_custom_call.1} parent=11 // pred_region
          _
        $region76: #{tpu_custom_call.1} parent=11 // pred_fallthru
          _
      $region12: #{tpu_custom_call.1} parent=5 // pred_fallthru
        _
      %p591 = scmp.lt.s32.totalorder %s32, 2
      // Predicated region
      $region77: #{tpu_custom_call.1} parent=5 // pred_check
        %p592 = pneg %p591
      $region78: #{tpu_custom_call.1} parent=5 // pred_check_branch
        %594 = sbr.rel (%p592) target = $region80
      $region79: #{tpu_custom_call.1} parent=5 // pred_region
        // Predicated region
        $region81: #{tpu_custom_call.1} parent=79 // pred_check
          %p595 = pneg %p73
        $region82: #{tpu_custom_call.1} parent=79 // pred_check_branch
          %597 = sbr.rel (%p595) target = $region84
        $region83: #{tpu_custom_call.1} parent=79 // pred_region
          %p598 = scmp.lt.s32.totalorder %s39, 1
          %s599 = scalar_select %p598, %s39, 1
          %p600 = scmp.lt.s32.totalorder %s40, 0
          %s601 = scalar_select %p600, %s40, 0
          %s602 = sadd.s32 %s601, %s599
          %s603 = smul.addr %s602, 8
          %s604 = scalar_lea.vmem %s0, %s603
        $region84: #{tpu_custom_call.1} parent=79 // pred_fallthru
          _
        // Predicated region
        $region85: #{tpu_custom_call.1} parent=79 // pred_check
          %p605 = pneg %p99
        $region86: #{tpu_custom_call.1} parent=79 // pred_check_branch
          %607 = sbr.rel (%p605) target = $region88
        $region87: #{tpu_custom_call.1} parent=79 // pred_region
          %s608 = sand.u32 %s89, 1
          %s609 = scalar_lea.sflag [#allocation8], %s608
          %s610 = sand.u32 %s89, 1
          %s611 = smul.addr %s610, 4
          %s612 = scalar_lea.vmem [#allocation7], %s611
          %614 = vsyncadd %s609, 0
          %s615 = smul.addr %s39, 4
          %s616 = scalar_lea.hbm %s1, %s615
          %s618 = sshll.u32 %s616, 4
          %s619 = int_to_ptr.hbm [resolvable:$true] %s618
          %s620 = sshll.u32 %s612, 4
          %s621 = int_to_ptr.vmem [resolvable:$true] %s620
          %623 = dma.hbm_to_vmem [thread:$0]  %s619, 64, %s621, %s609
        $region88: #{tpu_custom_call.1} parent=79 // pred_fallthru
          _
      $region80: #{tpu_custom_call.1} parent=5 // pred_fallthru
        _
      %p624 = scmp.le.s32.totalorder 1, %s32
      %p625 = scmp.lt.s32.totalorder %s32, 3
      %p626 = pnand %p624, %p625
      %p627 = pneg %p626
      // Predicated region
      $region89: #{tpu_custom_call.1} parent=5 // pred_check
        _
      $region90: #{tpu_custom_call.1} parent=5 // pred_check_branch
        %629 = sbr.rel (%p626) target = $region92
      $region91: #{tpu_custom_call.1} parent=5 // pred_region
        %s630 = ssub.s32 %s32, 1
        %s631 = sand.u32 %s92, 1
        %s632 = scalar_lea.sflag [#allocation8], %s631
        %s633 = sand.u32 %s92, 1
        %s634 = smul.addr %s633, 4
        %s635 = scalar_lea.vmem [#allocation7], %s634
        // Predicated region
        $region93: #{tpu_custom_call.1} parent=91 // pred_check
          %p636 = pneg %p105
        $region94: #{tpu_custom_call.1} parent=91 // pred_check_branch
          %638 = sbr.rel (%p636) target = $region96
        $region95: #{tpu_custom_call.1} parent=91 // pred_region
          %640 = dma.done %s632, 64
        $region96: #{tpu_custom_call.1} parent=91 // pred_fallthru
          _
        // Predicated region
        $region97: #{tpu_custom_call.1} parent=91 // pred_check
          %p641 = pneg %p210
        $region98: #{tpu_custom_call.1} parent=91 // pred_check_branch
          %643 = sbr.rel (%p641) target = $region100
        $region99: #{tpu_custom_call.1} parent=91 // pred_region
          %645 = dma.done [#allocation11], 256
        $region100: #{tpu_custom_call.1} parent=91 // pred_fallthru
          _
        // Predicated region
        $region101: #{tpu_custom_call.1} parent=91 // pred_check
          %p646 = pneg %p252
        $region102: #{tpu_custom_call.1} parent=91 // pred_check_branch
          %648 = sbr.rel (%p646) target = $region104
        $region103: #{tpu_custom_call.1} parent=91 // pred_region
          %650 = dma.done [#allocation11], 256
        $region104: #{tpu_custom_call.1} parent=91 // pred_fallthru
          _
        // Predicated region
        $region105: #{tpu_custom_call.1} parent=91 // pred_check
          %p651 = pneg %p341
        $region106: #{tpu_custom_call.1} parent=91 // pred_check_branch
          %653 = sbr.rel (%p651) target = $region108
        $region107: #{tpu_custom_call.1} parent=91 // pred_region
          %655 = dma.done [#allocation14], 256
        $region108: #{tpu_custom_call.1} parent=91 // pred_fallthru
          _
        %p656 = scmp.lt.s32.totalorder %s42, 1
        %s657 = scalar_select %p656, %s42, 1
        %p658 = scmp.lt.s32.totalorder %s43, 0
        %s659 = scalar_select %p658, %s43, 0
        %s660 = sadd.s32 %s659, %s657
        %s661 = smul.addr %s660, 8
        %s662 = scalar_lea.vmem %s0, %s661
        %p663 = pneg %p79
        %p664 = pneg %p76
        %s665 = sand.u32 %s92, 1
        %s666 = scalar_lea.sflag [#allocation8], %s665
        %s667 = sand.u32 %s92, 1
        %s668 = smul.addr %s667, 4
        %s669 = scalar_lea.vmem [#allocation7], %s668
        %p670 = pneg %p105
        %p671 = pneg %p102
        %p672 = pneg %p126
        %p673 = pneg %p123
        %p674 = pneg %p147
        %p675 = pneg %p144
        %p676 = pneg %p168
        %p677 = pneg %p165
        %p678 = pneg %p189
        %p679 = pneg %p186
        %p680 = pneg %p210
        %p681 = pneg %p207
        %p682 = pneg %p231
        %p683 = pneg %p228
        %p684 = pneg %p252
        %p685 = pneg %p249
        %p686 = pneg %p273
        %p687 = pneg %p270
        %p688 = pneg %p294
        %p689 = pneg %p291
        %p690 = pneg %p315
        %p691 = pneg %p312
        %p692 = pneg %p341
        %p693 = pneg %p338
        %p694 = scmp.lt.s32.totalorder %s44, 0
        %s695 = scalar_select %p694, %s44, 0
        %s696 = scalar_lea.vmem %s13, %s695
        %p697 = pneg %p367
        %p698 = pneg %p364
        %s699 = smul.u32 8, %s44
        %p700 = scmp.lt.s32.totalorder %s699, 7
        %s701 = scalar_select %p700, %s699, 7
        %s702 = smul.addr %s701, 4
        %s703 = scalar_lea.vmem %s14, %s702
        %p704 = pneg %p393
        %p705 = pneg %p390
        %p706 = pneg %p414
        %p707 = pneg %p411
        %p708 = pneg %p435
        %p709 = pneg %p432
        %p710 = pneg %p456
        %p711 = pneg %p453
        %p712 = pneg %p484
        %p713 = pneg %p481
        %s714 = sand.u32 %s471, 1
        %s715 = scalar_lea.sflag [#allocation9], %s714
        %s716 = sand.u32 %s471, 1
        %s717 = smul.addr %s716, 8
        %s718 = scalar_lea.vmem [#allocation15], %s717
        %p719 = scmp.lt.s32.totalorder %s42, 1
        %s720 = scalar_select %p719, %s42, 1
        %p721 = scmp.lt.s32.totalorder %s43, 0
        %s722 = scalar_select %p721, %s43, 0
        %s723 = sadd.s32 %s722, %s720
        %s724 = smul.addr %s723, 8
        %s725 = scalar_lea.vmem %s0, %s724
        %p726 = scmp.lt.s32.totalorder %s44, 0
        %s727 = scalar_select %p726, %s44, 0
        %s728 = scalar_lea.vmem %s13, %s727
        %s729 = smul.u32 8, %s44
        %p730 = scmp.lt.s32.totalorder %s729, 7
        %s731 = scalar_select %p730, %s729, 7
        %s732 = smul.addr %s731, 4
        %s733 = scalar_lea.vmem %s14, %s732
        %s734 = smul.u32 8, %s44
        %p736 = scmp.eq.s32.totalorder %s44, 0
        // Predicated region
        $region109: #{tpu_custom_call.1} parent=91 // pred_check
          %p737 = pneg %p736
        $region110: #{tpu_custom_call.1} parent=91 // pred_check_branch
          %739 = sbr.rel (%p737) target = $region112
        $region111: #{tpu_custom_call.1} parent=91 // pred_region
          %p740 = scmp.eq.s32.totalorder %s43, 0
          // Predicated region
          $region113: #{tpu_custom_call.1} parent=111 // pred_check
            %p741 = pneg %p740
          $region114: #{tpu_custom_call.1} parent=111 // pred_check_branch
            %743 = sbr.rel (%p741) target = $region116
          $region115: #{tpu_custom_call.1} parent=111 // pred_region
            %v744 = vld [vmem:[%s635] sm:$0xf]
            %v745 = vld [vmem:[%s4] sm:$0xf]
            %v746 = vld [vmem:[%s4 + $0x4] sm:$0xf]
            %v747 = vld [vmem:[%s4 + $0x8] sm:$0xf]
            %v748 = vld [vmem:[%s4 + $0xc] sm:$0xf]
            %v749 = vld [vmem:[%s5] sm:$0x1]
            %v751 = vperm.slane %v749, 0
            %v757 = vunpack.c.l.b16 %v745
            %v758 = vunpack.c.l.b16 %v746
            %v759 = vunpack.c.l.b16 %v747
            %v760 = vunpack.c.l.b16 %v748
            %v761 = vpack.c.b16 %v758, %v757
            %v762 = vpack.c.b16 %v760, %v759
            %vm765 = vcmask 261120
            %v767 = vsel %vm765, %v744, 0
            %769 = vmatpush.bf16.msra.mxu0 0
            %770 = vmatpush.bf16.msra.mxu0 0
            %771 = vmatpush.bf16.msra.mxu0 0
            %772 = vmatpush.bf16.msra.mxu0 0
            %773 = vmatpush.bf16.msra.mxu0 0
            %774 = vmatpush.bf16.msra.mxu0 0
            %775 = vmatpush.bf16.msra.mxu0 %v762
            %776 = vmatpush.bf16.msra.mxu0 %v761
            %777 = vmatmul.bf16.gmra.mxu0 %v767
            %v778 = vpop.f32.mrf.mxu0
            %v779 = vadd.f32 %v751, %v778
            %v780 = vpop.f32.mrf.mxu0
            %781 = vdwg.mxu0
            %v782 = vld [vmem:[#allocation10] sm:$0xf]
            %v783 = vld [vmem:[#allocation10 + $0x4] sm:$0xf]
            %v784 = vld [vmem:[#allocation10 + $0x8] sm:$0xf]
            %v785 = vld [vmem:[#allocation10 + $0xc] sm:$0xf]
            %v786 = vld [vmem:[%s7] sm:$0x1]
            %v788 = vperm.slane %v786, 0
            %v794 = vunpack.c.l.b16 %v782
            %v795 = vunpack.c.l.b16 %v783
            %v796 = vunpack.c.l.b16 %v784
            %v797 = vunpack.c.l.b16 %v785
            %v798 = vpack.c.b16 %v795, %v794
            %v799 = vpack.c.b16 %v797, %v796
            %802 = vmatpush.bf16.msra.mxu0 0
            %803 = vmatpush.bf16.msra.mxu0 0
            %804 = vmatpush.bf16.msra.mxu0 0
            %805 = vmatpush.bf16.msra.mxu0 0
            %806 = vmatpush.bf16.msra.mxu0 0
            %807 = vmatpush.bf16.msra.mxu0 0
            %808 = vmatpush.bf16.msra.mxu0 %v799
            %809 = vmatpush.bf16.msra.mxu0 %v798
            %810 = vmatmul.bf16.gmra.mxu0 %v767
            %v811 = vpop.f32.mrf.mxu0
            %v812 = vadd.f32 %v788, %v811
            %v813 = vpop.f32.mrf.mxu0
            %814 = vdwg.mxu0
            %816 = vrot.lane.b32.xlu0 %v779, 120
            %v817 = vpop.permute.xlu0 %816
            %819 = vrot.lane.b32.xlu0 %v779, 112
            %v820 = vpop.permute.xlu0 %819
            %822 = vrot.lane.b32.xlu0 %v779, 104
            %v823 = vpop.permute.xlu0 %822
            %v825 = vrot.slane %v820, 4
            %vm826 = vcmask 1047556
            %v827 = vsel %vm826, %v825, %v779
            %v828 = vrot.slane %v779, 4
            %v829 = vsel %vm826, %v820, %v828
            %v831 = vunpack.c.l.s4 1983009808
            %v832 = vunpack.c.0.s8 %v831
            %v833 = vperm.slane %v827, %v832
            %v835 = vunpack.c.l.s4 1983009808
            %v836 = vunpack.c.0.s8 %v835
            %v837 = vperm.slane %v829, %v836
            %v838 = vrot.slane %v823, 4
            %v839 = vsel %vm826, %v838, %v817
            %v840 = vrot.slane %v817, 4
            %v841 = vsel %vm826, %v823, %v840
            %v843 = vunpack.c.l.s4 1983009808
            %v844 = vunpack.c.0.s8 %v843
            %v845 = vperm.slane %v839, %v844
            %v847 = vunpack.c.l.s4 1983009808
            %v848 = vunpack.c.0.s8 %v847
            %v849 = vperm.slane %v841, %v848
            %v850 = vrot.slane %v845, 4
            %v851 = vsel %vm826, %v850, %v833
            %v852 = vrot.slane %v833, 4
            %v853 = vsel %vm826, %v845, %v852
            %v855 = vunpack.c.l.s4 1934713408
            %v856 = vunpack.c.0.s8 %v855
            %v857 = vperm.slane %v851, %v856
            %v859 = vunpack.c.l.s4 1934713408
            %v860 = vunpack.c.0.s8 %v859
            %v861 = vperm.slane %v853, %v860
            %v862 = vrot.slane %v849, 4
            %v863 = vsel %vm826, %v862, %v837
            %v864 = vrot.slane %v837, 4
            %v865 = vsel %vm826, %v849, %v864
            %v867 = vunpack.c.l.s4 1934713408
            %v868 = vunpack.c.0.s8 %v867
            %v869 = vperm.slane %v863, %v868
            %v871 = vunpack.c.l.s4 1934713408
            %v872 = vunpack.c.0.s8 %v871
            %v873 = vperm.slane %v865, %v872
            %v874 = vrot.slane %v857, 4
            %v875 = vsel %vm826, 0.0, %v874
            %v876 = vrot.slane %v861, 4
            %v877 = vsel %vm826, 0.0, %v876
            %v878 = vrot.slane %v869, 4
            %v879 = vsel %vm826, 0.0, %v878
            %v880 = vrot.slane %v873, 4
            %v881 = vsel %vm826, 0.0, %v880
            %v882 = vsel %vm826, %v876, %v857
            %v884 = vunpack.c.l.s4 1983009808
            %v885 = vunpack.c.0.s8 %v884
            %v886 = vperm.slane %v882, %v885
            %v887 = vrot.slane %v877, 4
            %v888 = vsel %vm826, %v887, %v875
            %v890 = vunpack.c.l.s4 1983009808
            %v891 = vunpack.c.0.s8 %v890
            %v892 = vperm.slane %v888, %v891
            %v893 = vsel %vm826, %v880, %v869
            %v895 = vunpack.c.l.s4 1983009808
            %v896 = vunpack.c.0.s8 %v895
            %v897 = vperm.slane %v893, %v896
            %v898 = vrot.slane %v881, 4
            %v899 = vsel %vm826, %v898, %v879
            %v901 = vunpack.c.l.s4 1983009808
            %v902 = vunpack.c.0.s8 %v901
            %v903 = vperm.slane %v899, %v902
            %v904 = vrot.slane %v892, 4
            %v905 = vsel %vm826, %v904, %v886
            %v906 = vrot.slane %v886, 4
            %v907 = vsel %vm826, %v892, %v906
            %v909 = vunpack.c.l.s4 1934713408
            %v910 = vunpack.c.0.s8 %v909
            %v911 = vperm.slane %v905, %v910
            %v913 = vunpack.c.l.s4 1934713408
            %v914 = vunpack.c.0.s8 %v913
            %v915 = vperm.slane %v907, %v914
            %v916 = vrot.slane %v903, 4
            %v917 = vsel %vm826, %v916, %v897
            %v918 = vrot.slane %v897, 4
            %v919 = vsel %vm826, %v903, %v918
            %v921 = vunpack.c.l.s4 1934713408
            %v922 = vunpack.c.0.s8 %v921
            %v923 = vperm.slane %v917, %v922
            %v925 = vunpack.c.l.s4 1934713408
            %v926 = vunpack.c.0.s8 %v925
            %v927 = vperm.slane %v919, %v926
            %v928 = vrot.slane %v923, 4
            %v929 = vsel %vm826, %v928, %v911
            %v930 = vrot.slane %v911, 4
            %v931 = vsel %vm826, %v923, %v930
            %v932 = vrot.slane %v927, 4
            %v933 = vsel %vm826, %v932, %v915
            %v934 = vrot.slane %v915, 4
            %v935 = vsel %vm826, %v927, %v934
            %v936 = vpack.c.bf16 %v929, %v929
            %v937 = vpack.c.bf16 %v931, %v931
            %v938 = vpack.c.bf16 %v933, %v933
            %v939 = vpack.c.bf16 %v935, %v935
            %vm940 = vcmask 60416
            %941 = vst.msk [vmem:[#allocation2] sm:$0xf] %vm940, %v936
            %942 = vst.msk [vmem:[#allocation2 + $0x4] sm:$0xf] %vm940, %v937
            %943 = vst.msk [vmem:[#allocation2 + $0x8] sm:$0xf] %vm940, %v938
            %944 = vst.msk [vmem:[#allocation2 + $0xc] sm:$0xf] %vm940, %v939
            %946 = vrot.lane.b32.xlu0 %v812, 120
            %v947 = vpop.permute.xlu0 %946
            %949 = vrot.lane.b32.xlu0 %v812, 112
            %v950 = vpop.permute.xlu0 %949
            %952 = vrot.lane.b32.xlu0 %v812, 104
            %v953 = vpop.permute.xlu0 %952
            %v955 = vrot.slane %v950, 4
            %v956 = vsel %vm826, %v955, %v812
            %v957 = vrot.slane %v812, 4
            %v958 = vsel %vm826, %v950, %v957
            %v960 = vunpack.c.l.s4 1983009808
            %v961 = vunpack.c.0.s8 %v960
            %v962 = vperm.slane %v956, %v961
            %v964 = vunpack.c.l.s4 1983009808
            %v965 = vunpack.c.0.s8 %v964
            %v966 = vperm.slane %v958, %v965
            %v967 = vrot.slane %v953, 4
            %v968 = vsel %vm826, %v967, %v947
            %v969 = vrot.slane %v947, 4
            %v970 = vsel %vm826, %v953, %v969
            %v972 = vunpack.c.l.s4 1983009808
            %v973 = vunpack.c.0.s8 %v972
            %v974 = vperm.slane %v968, %v973
            %v976 = vunpack.c.l.s4 1983009808
            %v977 = vunpack.c.0.s8 %v976
            %v978 = vperm.slane %v970, %v977
            %v979 = vrot.slane %v974, 4
            %v980 = vsel %vm826, %v979, %v962
            %v981 = vrot.slane %v962, 4
            %v982 = vsel %vm826, %v974, %v981
            %v984 = vunpack.c.l.s4 1934713408
            %v985 = vunpack.c.0.s8 %v984
            %v986 = vperm.slane %v980, %v985
            %v988 = vunpack.c.l.s4 1934713408
            %v989 = vunpack.c.0.s8 %v988
            %v990 = vperm.slane %v982, %v989
            %v991 = vrot.slane %v978, 4
            %v992 = vsel %vm826, %v991, %v966
            %v993 = vrot.slane %v966, 4
            %v994 = vsel %vm826, %v978, %v993
            %v996 = vunpack.c.l.s4 1934713408
            %v997 = vunpack.c.0.s8 %v996
            %v998 = vperm.slane %v992, %v997
            %v1000 = vunpack.c.l.s4 1934713408
            %v1001 = vunpack.c.0.s8 %v1000
            %v1002 = vperm.slane %v994, %v1001
            %v1003 = vrot.slane %v986, 4
            %v1004 = vsel %vm826, 0.0, %v1003
            %v1005 = vrot.slane %v990, 4
            %v1006 = vsel %vm826, 0.0, %v1005
            %v1007 = vrot.slane %v998, 4
            %v1008 = vsel %vm826, 0.0, %v1007
            %v1009 = vrot.slane %v1002, 4
            %v1010 = vsel %vm826, 0.0, %v1009
            %v1011 = vsel %vm826, %v1005, %v986
            %v1013 = vunpack.c.l.s4 1983009808
            %v1014 = vunpack.c.0.s8 %v1013
            %v1015 = vperm.slane %v1011, %v1014
            %v1016 = vrot.slane %v1006, 4
            %v1017 = vsel %vm826, %v1016, %v1004
            %v1019 = vunpack.c.l.s4 1983009808
            %v1020 = vunpack.c.0.s8 %v1019
            %v1021 = vperm.slane %v1017, %v1020
            %v1022 = vsel %vm826, %v1009, %v998
            %v1024 = vunpack.c.l.s4 1983009808
            %v1025 = vunpack.c.0.s8 %v1024
            %v1026 = vperm.slane %v1022, %v1025
            %v1027 = vrot.slane %v1010, 4
            %v1028 = vsel %vm826, %v1027, %v1008
            %v1030 = vunpack.c.l.s4 1983009808
            %v1031 = vunpack.c.0.s8 %v1030
            %v1032 = vperm.slane %v1028, %v1031
            %v1033 = vrot.slane %v1021, 4
            %v1034 = vsel %vm826, %v1033, %v1015
            %v1035 = vrot.slane %v1015, 4
            %v1036 = vsel %vm826, %v1021, %v1035
            %v1038 = vunpack.c.l.s4 1934713408
            %v1039 = vunpack.c.0.s8 %v1038
            %v1040 = vperm.slane %v1034, %v1039
            %v1042 = vunpack.c.l.s4 1934713408
            %v1043 = vunpack.c.0.s8 %v1042
            %v1044 = vperm.slane %v1036, %v1043
            %v1045 = vrot.slane %v1032, 4
            %v1046 = vsel %vm826, %v1045, %v1026
            %v1047 = vrot.slane %v1026, 4
            %v1048 = vsel %vm826, %v1032, %v1047
            %v1050 = vunpack.c.l.s4 1934713408
            %v1051 = vunpack.c.0.s8 %v1050
            %v1052 = vperm.slane %v1046, %v1051
            %v1054 = vunpack.c.l.s4 1934713408
            %v1055 = vunpack.c.0.s8 %v1054
            %v1056 = vperm.slane %v1048, %v1055
            %v1057 = vrot.slane %v1052, 4
            %v1058 = vsel %vm826, %v1057, %v1040
            %v1059 = vrot.slane %v1040, 4
            %v1060 = vsel %vm826, %v1052, %v1059
            %v1061 = vrot.slane %v1056, 4
            %v1062 = vsel %vm826, %v1061, %v1044
            %v1063 = vrot.slane %v1044, 4
            %v1064 = vsel %vm826, %v1056, %v1063
            %v1065 = vpack.c.bf16 %v1058, %v1058
            %v1066 = vpack.c.bf16 %v1060, %v1060
            %v1067 = vpack.c.bf16 %v1062, %v1062
            %v1068 = vpack.c.bf16 %v1064, %v1064
            %1069 = vst.msk [vmem:[#allocation3] sm:$0xf] %vm940, %v1065
            %1070 = vst.msk [vmem:[#allocation3 + $0x4] sm:$0xf] %vm940, %v1066
            %1071 = vst.msk [vmem:[#allocation3 + $0x8] sm:$0xf] %vm940, %v1067
            %1072 = vst.msk [vmem:[#allocation3 + $0xc] sm:$0xf] %vm940, %v1068
          $region116: #{tpu_custom_call.1} parent=111 // pred_fallthru
            _
          %v1073 = vld [vmem:[%s725] sm:$0xff]
          %v1074 = vpack.c.bf16 %v1073, %v1073
          %v1075 = vld [vmem:[%s2] sm:$0xf]
          %v1076 = vld [vmem:[%s2 + $0x4] sm:$0xf]
          %v1077 = vld [vmem:[%s2 + $0x8] sm:$0xf]
          %v1078 = vld [vmem:[%s2 + $0xc] sm:$0xf]
          %v1079 = vld [vmem:[%s3] sm:$0x1]
          %v1081 = vperm.slane %v1079, 0
          %v1087 = vunpack.c.l.b16 %v1075
          %v1088 = vunpack.c.l.b16 %v1076
          %v1089 = vunpack.c.l.b16 %v1077
          %v1090 = vunpack.c.l.b16 %v1078
          %v1091 = vpack.c.b16 %v1088, %v1087
          %v1092 = vpack.c.b16 %v1090, %v1089
          %vm1095 = vcmask 261120
          %v1097 = vsel %vm1095, %v1074, 0
          %1099 = vmatpush.bf16.msra.mxu0 0
          %1100 = vmatpush.bf16.msra.mxu0 0
          %1101 = vmatpush.bf16.msra.mxu0 0
          %1102 = vmatpush.bf16.msra.mxu0 0
          %1103 = vmatpush.bf16.msra.mxu0 0
          %1104 = vmatpush.bf16.msra.mxu0 0
          %1105 = vmatpush.bf16.msra.mxu0 %v1092
          %1106 = vmatpush.bf16.msra.mxu0 %v1091
          %1107 = vmatmul.bf16.gmra.mxu0 %v1097
          %v1108 = vpop.f32.mrf.mxu0
          %v1109 = vadd.f32 %v1081, %v1108
          %v1110 = vpop.f32.mrf.mxu0
          %1111 = vdwg.mxu0
          %1113 = vrot.lane.b32.xlu0 %v1109, 120
          %v1114 = vpop.permute.xlu0 %1113
          %1116 = vrot.lane.b32.xlu0 %v1109, 112
          %v1117 = vpop.permute.xlu0 %1116
          %1119 = vrot.lane.b32.xlu0 %v1109, 104
          %v1120 = vpop.permute.xlu0 %1119
          %v1122 = vrot.slane %v1117, 4
          %vm1123 = vcmask 1047556
          %v1124 = vsel %vm1123, %v1122, %v1109
          %v1125 = vrot.slane %v1109, 4
          %v1126 = vsel %vm1123, %v1117, %v1125
          %v1128 = vunpack.c.l.s4 1983009808
          %v1129 = vunpack.c.0.s8 %v1128
          %v1130 = vperm.slane %v1124, %v1129
          %v1132 = vunpack.c.l.s4 1983009808
          %v1133 = vunpack.c.0.s8 %v1132
          %v1134 = vperm.slane %v1126, %v1133
          %v1135 = vrot.slane %v1120, 4
          %v1136 = vsel %vm1123, %v1135, %v1114
          %v1137 = vrot.slane %v1114, 4
          %v1138 = vsel %vm1123, %v1120, %v1137
          %v1140 = vunpack.c.l.s4 1983009808
          %v1141 = vunpack.c.0.s8 %v1140
          %v1142 = vperm.slane %v1136, %v1141
          %v1144 = vunpack.c.l.s4 1983009808
          %v1145 = vunpack.c.0.s8 %v1144
          %v1146 = vperm.slane %v1138, %v1145
          %v1147 = vrot.slane %v1142, 4
          %v1148 = vsel %vm1123, %v1147, %v1130
          %v1149 = vrot.slane %v1130, 4
          %v1150 = vsel %vm1123, %v1142, %v1149
          %v1152 = vunpack.c.l.s4 1934713408
          %v1153 = vunpack.c.0.s8 %v1152
          %v1154 = vperm.slane %v1148, %v1153
          %v1156 = vunpack.c.l.s4 1934713408
          %v1157 = vunpack.c.0.s8 %v1156
          %v1158 = vperm.slane %v1150, %v1157
          %v1159 = vrot.slane %v1146, 4
          %v1160 = vsel %vm1123, %v1159, %v1134
          %v1161 = vrot.slane %v1134, 4
          %v1162 = vsel %vm1123, %v1146, %v1161
          %v1164 = vunpack.c.l.s4 1934713408
          %v1165 = vunpack.c.0.s8 %v1164
          %v1166 = vperm.slane %v1160, %v1165
          %v1168 = vunpack.c.l.s4 1934713408
          %v1169 = vunpack.c.0.s8 %v1168
          %v1170 = vperm.slane %v1162, %v1169
          %v1171 = vrot.slane %v1154, 4
          %v1172 = vsel %vm1123, 0.0, %v1171
          %v1173 = vrot.slane %v1158, 4
          %v1174 = vsel %vm1123, 0.0, %v1173
          %v1175 = vrot.slane %v1166, 4
          %v1176 = vsel %vm1123, 0.0, %v1175
          %v1177 = vrot.slane %v1170, 4
          %v1178 = vsel %vm1123, 0.0, %v1177
          %v1179 = vsel %vm1123, %v1173, %v1154
          %v1181 = vunpack.c.l.s4 1983009808
          %v1182 = vunpack.c.0.s8 %v1181
          %v1183 = vperm.slane %v1179, %v1182
          %v1184 = vrot.slane %v1174, 4
          %v1185 = vsel %vm1123, %v1184, %v1172
          %v1187 = vunpack.c.l.s4 1983009808
          %v1188 = vunpack.c.0.s8 %v1187
          %v1189 = vperm.slane %v1185, %v1188
          %v1190 = vsel %vm1123, %v1177, %v1166
          %v1192 = vunpack.c.l.s4 1983009808
          %v1193 = vunpack.c.0.s8 %v1192
          %v1194 = vperm.slane %v1190, %v1193
          %v1195 = vrot.slane %v1178, 4
          %v1196 = vsel %vm1123, %v1195, %v1176
          %v1198 = vunpack.c.l.s4 1983009808
          %v1199 = vunpack.c.0.s8 %v1198
          %v1200 = vperm.slane %v1196, %v1199
          %v1201 = vrot.slane %v1189, 4
          %v1202 = vsel %vm1123, %v1201, %v1183
          %v1203 = vrot.slane %v1183, 4
          %v1204 = vsel %vm1123, %v1189, %v1203
          %v1206 = vunpack.c.l.s4 1934713408
          %v1207 = vunpack.c.0.s8 %v1206
          %v1208 = vperm.slane %v1202, %v1207
          %v1210 = vunpack.c.l.s4 1934713408
          %v1211 = vunpack.c.0.s8 %v1210
          %v1212 = vperm.slane %v1204, %v1211
          %v1213 = vrot.slane %v1200, 4
          %v1214 = vsel %vm1123, %v1213, %v1194
          %v1215 = vrot.slane %v1194, 4
          %v1216 = vsel %vm1123, %v1200, %v1215
          %v1218 = vunpack.c.l.s4 1934713408
          %v1219 = vunpack.c.0.s8 %v1218
          %v1220 = vperm.slane %v1214, %v1219
          %v1222 = vunpack.c.l.s4 1934713408
          %v1223 = vunpack.c.0.s8 %v1222
          %v1224 = vperm.slane %v1216, %v1223
          %v1225 = vrot.slane %v1220, 4
          %v1226 = vsel %vm1123, %v1225, %v1208
          %v1227 = vrot.slane %v1208, 4
          %v1228 = vsel %vm1123, %v1220, %v1227
          %v1229 = vrot.slane %v1224, 4
          %v1230 = vsel %vm1123, %v1229, %v1212
          %v1231 = vrot.slane %v1212, 4
          %v1232 = vsel %vm1123, %v1224, %v1231
          %v1233 = vpack.c.bf16 %v1226, %v1226
          %v1234 = vpack.c.bf16 %v1228, %v1228
          %v1235 = vpack.c.bf16 %v1230, %v1230
          %v1236 = vpack.c.bf16 %v1232, %v1232
          %v1237 = vld [vmem:[#allocation2] sm:$0xf]
          %v1238 = vld [vmem:[#allocation2 + $0x4] sm:$0xf]
          %v1239 = vld [vmem:[#allocation2 + $0x8] sm:$0xf]
          %v1240 = vld [vmem:[#allocation2 + $0xc] sm:$0xf]
          %v1241 = vld [vmem:[#allocation3] sm:$0xf]
          %v1242 = vld [vmem:[#allocation3 + $0x4] sm:$0xf]
          %v1243 = vld [vmem:[#allocation3 + $0x8] sm:$0xf]
          %v1244 = vld [vmem:[#allocation3 + $0xc] sm:$0xf]
          %vm1245 = vcmask 64512
          %v1247 = vsel %vm1245, %v1233, 0
          %v1250 = vsel %vm1245, %v1237, 0
          %1252 = vmatpush.bf16.xpose.msra.mxu0 0
          %1253 = vmatpush.bf16.xpose.msra.mxu0 0
          %1254 = vmatpush.bf16.xpose.msra.mxu0 0
          %1255 = vmatpush.bf16.xpose.msra.mxu0 0
          %1256 = vmatpush.bf16.xpose.msra.mxu0 0
          %1257 = vmatpush.bf16.xpose.msra.mxu0 0
          %1258 = vmatpush.bf16.xpose.msra.mxu0 0
          %1259 = vmatpush.bf16.xpose.msra.mxu0 %v1250
          %1260 = vmatmul.bf16.gmra.mxu0 %v1247
          %v1261 = vpop.f32.mrf.mxu0
          %v1262 = vadd.f32 0.0, %v1261
          %v1263 = vpop.f32.mrf.mxu0
          %1264 = vdwg.mxu0
          %v1266 = vsel %vm1245, %v1234, 0
          %v1269 = vsel %vm1245, %v1238, 0
          %1271 = vmatpush.bf16.xpose.msra.mxu0 0
          %1272 = vmatpush.bf16.xpose.msra.mxu0 0
          %1273 = vmatpush.bf16.xpose.msra.mxu0 0
          %1274 = vmatpush.bf16.xpose.msra.mxu0 0
          %1275 = vmatpush.bf16.xpose.msra.mxu0 0
          %1276 = vmatpush.bf16.xpose.msra.mxu0 0
          %1277 = vmatpush.bf16.xpose.msra.mxu0 0
          %1278 = vmatpush.bf16.xpose.msra.mxu0 %v1269
          %1279 = vmatmul.bf16.gmra.mxu0 %v1266
          %v1280 = vpop.f32.mrf.mxu0
          %v1281 = vadd.f32 0.0, %v1280
          %v1282 = vpop.f32.mrf.mxu0
          %1283 = vdwg.mxu0
          %v1285 = vsel %vm1245, %v1235, 0
          %v1288 = vsel %vm1245, %v1239, 0
          %1290 = vmatpush.bf16.xpose.msra.mxu0 0
          %1291 = vmatpush.bf16.xpose.msra.mxu0 0
          %1292 = vmatpush.bf16.xpose.msra.mxu0 0
          %1293 = vmatpush.bf16.xpose.msra.mxu0 0
          %1294 = vmatpush.bf16.xpose.msra.mxu0 0
          %1295 = vmatpush.bf16.xpose.msra.mxu0 0
          %1296 = vmatpush.bf16.xpose.msra.mxu0 0
          %1297 = vmatpush.bf16.xpose.msra.mxu0 %v1288
          %1298 = vmatmul.bf16.gmra.mxu0 %v1285
          %v1299 = vpop.f32.mrf.mxu0
          %v1300 = vadd.f32 0.0, %v1299
          %v1301 = vpop.f32.mrf.mxu0
          %1302 = vdwg.mxu0
          %v1304 = vsel %vm1245, %v1236, 0
          %v1307 = vsel %vm1245, %v1240, 0
          %1309 = vmatpush.bf16.xpose.msra.mxu0 0
          %1310 = vmatpush.bf16.xpose.msra.mxu0 0
          %1311 = vmatpush.bf16.xpose.msra.mxu0 0
          %1312 = vmatpush.bf16.xpose.msra.mxu0 0
          %1313 = vmatpush.bf16.xpose.msra.mxu0 0
          %1314 = vmatpush.bf16.xpose.msra.mxu0 0
          %1315 = vmatpush.bf16.xpose.msra.mxu0 0
          %1316 = vmatpush.bf16.xpose.msra.mxu0 %v1307
          %1317 = vmatmul.bf16.gmra.mxu0 %v1304
          %v1318 = vpop.f32.mrf.mxu0
          %v1319 = vadd.f32 0.0, %v1318
          %v1320 = vpop.f32.mrf.mxu0
          %1321 = vdwg.mxu0
          %v1322 = vmul.f32 %v1262, 0.35355338
          %v1323 = vmul.f32 %v1281, 0.35355338
          %v1324 = vmul.f32 %v1300, 0.35355338
          %v1325 = vmul.f32 %v1319, 0.35355338
          %v1326 = vsel %vm1245, %v1322, -inf
          %1327 = vmax.xlane.f32.xlu0 %v1326
          %v1328 = vpop.xlane.xlu0 %1327
          %v1329 = vsel %vm1245, %v1323, -inf
          %1330 = vmax.xlane.f32.xlu0 %v1329
          %v1331 = vpop.xlane.xlu0 %1330
          %v1332 = vsel %vm1245, %v1324, -inf
          %1333 = vmax.xlane.f32.xlu0 %v1332
          %v1334 = vpop.xlane.xlu0 %1333
          %v1335 = vsel %vm1245, %v1325, -inf
          %1336 = vmax.xlane.f32.xlu0 %v1335
          %v1337 = vpop.xlane.xlu0 %1336
          %v1338 = vsub.f32 -inf, %v1328
          %v1339 = vsub.f32 -inf, %v1331
          %v1340 = vsub.f32 -inf, %v1334
          %v1341 = vsub.f32 -inf, %v1337
          %v1342 = vmul.f32 %v1338, 1.442695
          %v1343 = vpow.pop %v1342
          %v1344 = vmul.f32 %v1339, 1.442695
          %v1345 = vpow.pop %v1344
          %v1346 = vmul.f32 %v1340, 1.442695
          %v1347 = vpow.pop %v1346
          %v1348 = vmul.f32 %v1341, 1.442695
          %v1349 = vpow.pop %v1348
          %v1350 = vsub.f32 %v1322, %v1328
          %v1351 = vsub.f32 %v1323, %v1331
          %v1352 = vsub.f32 %v1324, %v1334
          %v1353 = vsub.f32 %v1325, %v1337
          %v1354 = vmul.f32 %v1350, 1.442695
          %v1355 = vpow.pop %v1354
          %v1356 = vmul.f32 %v1351, 1.442695
          %v1357 = vpow.pop %v1356
          %v1358 = vmul.f32 %v1352, 1.442695
          %v1359 = vpow.pop %v1358
          %v1360 = vmul.f32 %v1353, 1.442695
          %v1361 = vpow.pop %v1360
          %v1362 = vmul.f32 %v1343, 0.0
          %v1363 = vmul.f32 %v1345, 0.0
          %v1364 = vmul.f32 %v1347, 0.0
          %v1365 = vmul.f32 %v1349, 0.0
          %v1366 = vsel %vm1245, %v1355, 0.0
          %1367 = vadd.xlane.f32.xlu0 %v1366
          %v1368 = vpop.xlane.xlu0 %1367
          %v1369 = vsel %vm1245, %v1357, 0.0
          %1370 = vadd.xlane.f32.xlu0 %v1369
          %v1371 = vpop.xlane.xlu0 %1370
          %v1372 = vsel %vm1245, %v1359, 0.0
          %1373 = vadd.xlane.f32.xlu0 %v1372
          %v1374 = vpop.xlane.xlu0 %1373
          %v1375 = vsel %vm1245, %v1361, 0.0
          %1376 = vadd.xlane.f32.xlu0 %v1375
          %v1377 = vpop.xlane.xlu0 %1376
          %v1378 = vadd.f32 %v1362, %v1368
          %v1379 = vadd.f32 %v1363, %v1371
          %v1380 = vadd.f32 %v1364, %v1374
          %v1381 = vadd.f32 %v1365, %v1377
          %v1382 = vpack.c.bf16 %v1355, %v1355
          %v1383 = vpack.c.bf16 %v1357, %v1357
          %v1384 = vpack.c.bf16 %v1359, %v1359
          %v1385 = vpack.c.bf16 %v1361, %v1361
          %v1387 = vsel %vm1245, %v1382, 0
          %vm1389 = vcmask 1043456
          %v1391 = vsel %vm1389, %v1241, 0
          %1393 = vmatpush.bf16.msra.mxu0 0
          %1394 = vmatpush.bf16.msra.mxu0 0
          %1395 = vmatpush.bf16.msra.mxu0 0
          %1396 = vmatpush.bf16.msra.mxu0 0
          %1397 = vmatpush.bf16.msra.mxu0 0
          %1398 = vmatpush.bf16.msra.mxu0 0
          %1399 = vmatpush.bf16.msra.mxu0 0
          %1400 = vmatpush.bf16.msra.mxu0 %v1391
          %1401 = vmatmul.bf16.gmra.mxu0 %v1387
          %v1402 = vpop.f32.mrf.mxu0
          %v1403 = vadd.f32 0.0, %v1402
          %v1404 = vpop.f32.mrf.mxu0
          %1405 = vdwg.mxu0
          %v1407 = vsel %vm1245, %v1383, 0
          %v1410 = vsel %vm1389, %v1242, 0
          %1412 = vmatpush.bf16.msra.mxu0 0
          %1413 = vmatpush.bf16.msra.mxu0 0
          %1414 = vmatpush.bf16.msra.mxu0 0
          %1415 = vmatpush.bf16.msra.mxu0 0
          %1416 = vmatpush.bf16.msra.mxu0 0
          %1417 = vmatpush.bf16.msra.mxu0 0
          %1418 = vmatpush.bf16.msra.mxu0 0
          %1419 = vmatpush.bf16.msra.mxu0 %v1410
          %1420 = vmatmul.bf16.gmra.mxu0 %v1407
          %v1421 = vpop.f32.mrf.mxu0
          %v1422 = vadd.f32 0.0, %v1421
          %v1423 = vpop.f32.mrf.mxu0
          %1424 = vdwg.mxu0
          %v1426 = vsel %vm1245, %v1384, 0
          %v1429 = vsel %vm1389, %v1243, 0
          %1431 = vmatpush.bf16.msra.mxu0 0
          %1432 = vmatpush.bf16.msra.mxu0 0
          %1433 = vmatpush.bf16.msra.mxu0 0
          %1434 = vmatpush.bf16.msra.mxu0 0
          %1435 = vmatpush.bf16.msra.mxu0 0
          %1436 = vmatpush.bf16.msra.mxu0 0
          %1437 = vmatpush.bf16.msra.mxu0 0
          %1438 = vmatpush.bf16.msra.mxu0 %v1429
          %1439 = vmatmul.bf16.gmra.mxu0 %v1426
          %v1440 = vpop.f32.mrf.mxu0
          %v1441 = vadd.f32 0.0, %v1440
          %v1442 = vpop.f32.mrf.mxu0
          %1443 = vdwg.mxu0
          %v1445 = vsel %vm1245, %v1385, 0
          %v1448 = vsel %vm1389, %v1244, 0
          %1450 = vmatpush.bf16.msra.mxu0 0
          %1451 = vmatpush.bf16.msra.mxu0 0
          %1452 = vmatpush.bf16.msra.mxu0 0
          %1453 = vmatpush.bf16.msra.mxu0 0
          %1454 = vmatpush.bf16.msra.mxu0 0
          %1455 = vmatpush.bf16.msra.mxu0 0
          %1456 = vmatpush.bf16.msra.mxu0 0
          %1457 = vmatpush.bf16.msra.mxu0 %v1448
          %1458 = vmatmul.bf16.gmra.mxu0 %v1445
          %v1459 = vpop.f32.mrf.mxu0
          %v1460 = vadd.f32 0.0, %v1459
          %v1461 = vpop.f32.mrf.mxu0
          %1462 = vdwg.mxu0
          %v1463 = vadd.f32 %v1362, %v1403
          %v1464 = vadd.f32 %v1363, %v1422
          %v1465 = vadd.f32 %v1364, %v1441
          %v1466 = vadd.f32 %v1365, %v1460
          %v1467 = vrcp.pop %v1378
          %v1468 = vmul.f32 %v1378, %v1467
          %v1469 = vsub.f32 1.0, %v1468
          %v1470 = vmul.f32 %v1467, %v1469
          %v1471 = vadd.f32 %v1467, %v1470
          %vm1472 = vweird.f32 %v1378
          %vm1473 = vweird.f32 %v1467
          %vm1474 = vmor %vm1472, %vm1473
          %v1475 = vsel %vm1474, %v1467, %v1471
          %v1476 = vand.u32 2147483647, %v1378
          %vm1477 = vcmp.eq.f32.partialorder %v1476, 8.507059e+37
          %v1478 = vand.u32 %v1378, 2147483648
          %v1479 = vor.u32 1.1754944e-38, %v1478
          %v1480 = vsel %vm1477, %v1479, %v1475
          %v1481 = vrcp.pop %v1379
          %v1482 = vmul.f32 %v1379, %v1481
          %v1483 = vsub.f32 1.0, %v1482
          %v1484 = vmul.f32 %v1481, %v1483
          %v1485 = vadd.f32 %v1481, %v1484
          %vm1486 = vweird.f32 %v1379
          %vm1487 = vweird.f32 %v1481
          %vm1488 = vmor %vm1486, %vm1487
          %v1489 = vsel %vm1488, %v1481, %v1485
          %v1490 = vand.u32 2147483647, %v1379
          %vm1491 = vcmp.eq.f32.partialorder %v1490, 8.507059e+37
          %v1492 = vand.u32 %v1379, 2147483648
          %v1493 = vor.u32 1.1754944e-38, %v1492
          %v1494 = vsel %vm1491, %v1493, %v1489
          %v1495 = vrcp.pop %v1380
          %v1496 = vmul.f32 %v1380, %v1495
          %v1497 = vsub.f32 1.0, %v1496
          %v1498 = vmul.f32 %v1495, %v1497
          %v1499 = vadd.f32 %v1495, %v1498
          %vm1500 = vweird.f32 %v1380
          %vm1501 = vweird.f32 %v1495
          %vm1502 = vmor %vm1500, %vm1501
          %v1503 = vsel %vm1502, %v1495, %v1499
          %v1504 = vand.u32 2147483647, %v1380
          %vm1505 = vcmp.eq.f32.partialorder %v1504, 8.507059e+37
          %v1506 = vand.u32 %v1380, 2147483648
          %v1507 = vor.u32 1.1754944e-38, %v1506
          %v1508 = vsel %vm1505, %v1507, %v1503
          %v1509 = vrcp.pop %v1381
          %v1510 = vmul.f32 %v1381, %v1509
          %v1511 = vsub.f32 1.0, %v1510
          %v1512 = vmul.f32 %v1509, %v1511
          %v1513 = vadd.f32 %v1509, %v1512
          %vm1514 = vweird.f32 %v1381
          %vm1515 = vweird.f32 %v1509
          %vm1516 = vmor %vm1514, %vm1515
          %v1517 = vsel %vm1516, %v1509, %v1513
          %v1518 = vand.u32 2147483647, %v1381
          %vm1519 = vcmp.eq.f32.partialorder %v1518, 8.507059e+37
          %v1520 = vand.u32 %v1381, 2147483648
          %v1521 = vor.u32 1.1754944e-38, %v1520
          %v1522 = vsel %vm1519, %v1521, %v1517
          %v1523 = vmul.f32 %v1463, %v1480
          %v1524 = vmul.f32 %v1464, %v1494
          %v1525 = vmul.f32 %v1465, %v1508
          %v1526 = vmul.f32 %v1466, %v1522
          %v1527 = vrot.slane %v1525, 4
          %v1528 = vsel %vm1123, %v1527, %v1523
          %v1529 = vrot.slane %v1523, 4
          %v1530 = vsel %vm1123, %v1525, %v1529
          %v1532 = vunpack.c.l.s4 1983009808
          %v1533 = vunpack.c.0.s8 %v1532
          %v1534 = vperm.slane %v1528, %v1533
          %v1536 = vunpack.c.l.s4 1983009808
          %v1537 = vunpack.c.0.s8 %v1536
          %v1538 = vperm.slane %v1530, %v1537
          %v1539 = vrot.slane %v1526, 4
          %v1540 = vsel %vm1123, %v1539, %v1524
          %v1541 = vrot.slane %v1524, 4
          %v1542 = vsel %vm1123, %v1526, %v1541
          %v1544 = vunpack.c.l.s4 1983009808
          %v1545 = vunpack.c.0.s8 %v1544
          %v1546 = vperm.slane %v1540, %v1545
          %v1548 = vunpack.c.l.s4 1983009808
          %v1549 = vunpack.c.0.s8 %v1548
          %v1550 = vperm.slane %v1542, %v1549
          %v1551 = vrot.slane %v1546, 4
          %v1552 = vsel %vm1123, %v1551, %v1534
          %v1553 = vrot.slane %v1534, 4
          %v1554 = vsel %vm1123, %v1546, %v1553
          %v1556 = vunpack.c.l.s4 1934713408
          %v1557 = vunpack.c.0.s8 %v1556
          %v1558 = vperm.slane %v1552, %v1557
          %v1560 = vunpack.c.l.s4 1934713408
          %v1561 = vunpack.c.0.s8 %v1560
          %v1562 = vperm.slane %v1554, %v1561
          %v1563 = vrot.slane %v1550, 4
          %v1564 = vsel %vm1123, %v1563, %v1538
          %v1565 = vrot.slane %v1538, 4
          %v1566 = vsel %vm1123, %v1550, %v1565
          %v1568 = vunpack.c.l.s4 1934713408
          %v1569 = vunpack.c.0.s8 %v1568
          %v1570 = vperm.slane %v1564, %v1569
          %v1572 = vunpack.c.l.s4 1934713408
          %v1573 = vunpack.c.0.s8 %v1572
          %v1574 = vperm.slane %v1566, %v1573
          %v1575 = vrot.slane %v1558, 4
          %v1576 = vsel %vm1123, 0.0, %v1575
          %v1577 = vrot.slane %v1562, 4
          %v1578 = vsel %vm1123, 0.0, %v1577
          %v1579 = vrot.slane %v1570, 4
          %v1580 = vsel %vm1123, 0.0, %v1579
          %v1581 = vrot.slane %v1574, 4
          %v1582 = vsel %vm1123, 0.0, %v1581
          %v1583 = vsel %vm1123, %v1577, %v1558
          %v1585 = vunpack.c.l.s4 1983009808
          %v1586 = vunpack.c.0.s8 %v1585
          %v1587 = vperm.slane %v1583, %v1586
          %v1588 = vrot.slane %v1578, 4
          %v1589 = vsel %vm1123, %v1588, %v1576
          %v1591 = vunpack.c.l.s4 1983009808
          %v1592 = vunpack.c.0.s8 %v1591
          %v1593 = vperm.slane %v1589, %v1592
          %v1594 = vsel %vm1123, %v1581, %v1570
          %v1596 = vunpack.c.l.s4 1983009808
          %v1597 = vunpack.c.0.s8 %v1596
          %v1598 = vperm.slane %v1594, %v1597
          %v1599 = vrot.slane %v1582, 4
          %v1600 = vsel %vm1123, %v1599, %v1580
          %v1602 = vunpack.c.l.s4 1983009808
          %v1603 = vunpack.c.0.s8 %v1602
          %v1604 = vperm.slane %v1600, %v1603
          %v1605 = vrot.slane %v1593, 4
          %v1606 = vsel %vm1123, %v1605, %v1587
          %v1607 = vrot.slane %v1587, 4
          %v1608 = vsel %vm1123, %v1593, %v1607
          %v1610 = vunpack.c.l.s4 1934713408
          %v1611 = vunpack.c.0.s8 %v1610
          %v1612 = vperm.slane %v1606, %v1611
          %v1614 = vunpack.c.l.s4 1934713408
          %v1615 = vunpack.c.0.s8 %v1614
          %v1616 = vperm.slane %v1608, %v1615
          %v1617 = vrot.slane %v1604, 4
          %v1618 = vsel %vm1123, %v1617, %v1598
          %v1619 = vrot.slane %v1598, 4
          %v1620 = vsel %vm1123, %v1604, %v1619
          %v1622 = vunpack.c.l.s4 1934713408
          %v1623 = vunpack.c.0.s8 %v1622
          %v1624 = vperm.slane %v1618, %v1623
          %v1626 = vunpack.c.l.s4 1934713408
          %v1627 = vunpack.c.0.s8 %v1626
          %v1628 = vperm.slane %v1620, %v1627
          %v1629 = vrot.slane %v1624, 4
          %v1630 = vsel %vm1123, %v1629, %v1612
          %v1631 = vrot.slane %v1612, 4
          %v1632 = vsel %vm1123, %v1624, %v1631
          %v1633 = vrot.slane %v1628, 4
          %v1634 = vsel %vm1123, %v1633, %v1616
          %v1635 = vrot.slane %v1616, 4
          %v1636 = vsel %vm1123, %v1628, %v1635
          %1638 = vrot.lane.b32.xlu0 %v1632, 8
          %v1639 = vpop.permute.xlu0 %1638
          %1642 = vrot.lane.b32.xlu0 %v1634, 16
          %v1643 = vpop.permute.xlu0 %1642
          %1646 = vrot.lane.b32.xlu0 %v1636, 24
          %v1647 = vpop.permute.xlu0 %1646
          %v1649 = vsel %vm1245, %v1630, %v1639
          %vm1650 = vcmask 130048
          %v1651 = vsel %vm1650, %v1649, %v1643
          %vm1652 = vcmask 195584
          %v1653 = vsel %vm1652, %v1651, %v1647
          %v1654 = vpack.c.bf16 %v1653, %v1653
          %v1655 = vld [vmem:[#allocation12] sm:$0xf]
          %v1656 = vld [vmem:[#allocation12 + $0x4] sm:$0xf]
          %v1657 = vld [vmem:[#allocation12 + $0x8] sm:$0xf]
          %v1658 = vld [vmem:[#allocation12 + $0xc] sm:$0xf]
          %v1659 = vld [vmem:[%s9] sm:$0x1]
          %v1661 = vperm.slane %v1659, 0
          %v1667 = vunpack.c.l.b16 %v1655
          %v1668 = vunpack.c.l.b16 %v1656
          %v1669 = vunpack.c.l.b16 %v1657
          %v1670 = vunpack.c.l.b16 %v1658
          %v1671 = vpack.c.b16 %v1668, %v1667
          %v1672 = vpack.c.b16 %v1670, %v1669
          %v1676 = vsel %vm1095, %v1654, 0
          %1678 = vmatpush.bf16.msra.mxu0 0
          %1679 = vmatpush.bf16.msra.mxu0 0
          %1680 = vmatpush.bf16.msra.mxu0 0
          %1681 = vmatpush.bf16.msra.mxu0 0
          %1682 = vmatpush.bf16.msra.mxu0 0
          %1683 = vmatpush.bf16.msra.mxu0 0
          %1684 = vmatpush.bf16.msra.mxu0 %v1672
          %1685 = vmatpush.bf16.msra.mxu0 %v1671
          %1686 = vmatmul.bf16.gmra.mxu0 %v1676
          %v1687 = vpop.f32.mrf.mxu0
          %v1688 = vadd.f32 %v1661, %v1687
          %v1689 = vpop.f32.mrf.mxu0
          %1690 = vdwg.mxu0
          %v1691 = vadd.f32 %v1073, %v1688
          %v1692 = vld [vmem:[%s10] sm:$0x1]
          %v1693 = vld [vmem:[%s11] sm:$0x1]
          %v1694 = vsel %vm1095, %v1691, 0.0
          %1695 = vadd.xlane.f32.xlu0 %v1694
          %v1696 = vpop.xlane.xlu0 %1695
          %v1697 = vrcp.pop 32.0
          %v1698 = vmul.f32 32.0, %v1697
          %v1699 = vsub.f32 1.0, %v1698
          %v1700 = vmul.f32 %v1697, %v1699
          %v1701 = vadd.f32 %v1697, %v1700
          %vm1702 = vweird.f32 %v1697
          %v1703 = vsel %vm1702, %v1697, %v1701
          %v1704 = vmul.f32 %v1696, %v1703
          %v1705 = vsub.f32 %v1691, %v1704
          %v1706 = vmul.f32 %v1705, %v1705
          %v1707 = vsel %vm1095, %v1706, 0.0
          %1708 = vadd.xlane.f32.xlu0 %v1707
          %v1709 = vpop.xlane.xlu0 %1708
          %v1710 = vmul.f32 %v1709, %v1703
          %v1711 = vadd.f32 %v1710, 1e-05
          %v1712 = vrsqrt.pop %v1711
          %v1713 = vmul.f32 %v1712, %v1711
          %v1714 = vmul.f32 %v1713, %v1712
          %v1715 = vmul.f32 0.5, %v1714
          %v1716 = vsub.f32 1.5, %v1715
          %v1717 = vmul.f32 %v1712, %v1716
          %vm1718 = vweird.f32 %v1711
          %vm1719 = vweird.f32 %v1712
          %vm1720 = vmor %vm1718, %vm1719
          %v1721 = vsel %vm1720, %v1712, %v1717
          %v1722 = vmul.f32 %v1705, %v1721
          %v1724 = vperm.slane %v1692, 0
          %v1726 = vmul.f32 %v1722, %v1724
          %v1728 = vperm.slane %v1693, 0
          %v1730 = vadd.f32 %v1726, %v1728
          %1731 = vst.msk [vmem:[#allocation4] sm:$0xff] %vm1095, %v1730
          %v1732 = vpack.c.bf16 %v1730, %v1730
          %vm1733 = vcmask 257024
          %1734 = vst.msk [vmem:[#allocation5] sm:$0xf] %vm1733, %v1732
          %1735 = vst.msk [vmem:[#allocation6] sm:$0xff] %vm1095, 0.0
        $region112: #{tpu_custom_call.1} parent=91 // pred_fallthru
          _
        %v1736 = vld [vmem:[#allocation5] sm:$0xf]
        %v1737 = vld [vmem:[#allocation13] sm:$0xf]
        %v1738 = vld [vmem:[#allocation13 + $0x4] sm:$0xf]
        %v1739 = vld [vmem:[#allocation13 + $0x8] sm:$0xf]
        %v1740 = vld [vmem:[#allocation13 + $0xc] sm:$0xf]
        %v1741 = vld [vmem:[%s728] sm:$0x1]
        %v1743 = vperm.slane %v1741, 0
        %v1749 = vunpack.c.l.b16 %v1737
        %v1750 = vunpack.c.l.b16 %v1738
        %v1751 = vunpack.c.l.b16 %v1739
        %v1752 = vunpack.c.l.b16 %v1740
        %v1753 = vpack.c.b16 %v1750, %v1749
        %v1754 = vpack.c.b16 %v1752, %v1751
        %vm1757 = vcmask 261120
        %v1759 = vsel %vm1757, %v1736, 0
        %1761 = vmatpush.bf16.msra.mxu0 0
        %1762 = vmatpush.bf16.msra.mxu0 0
        %1763 = vmatpush.bf16.msra.mxu0 0
        %1764 = vmatpush.bf16.msra.mxu0 0
        %1765 = vmatpush.bf16.msra.mxu0 0
        %1766 = vmatpush.bf16.msra.mxu0 0
        %1767 = vmatpush.bf16.msra.mxu0 %v1754
        %1768 = vmatpush.bf16.msra.mxu0 %v1753
        %1769 = vmatmul.bf16.gmra.mxu0 %v1759
        %v1770 = vpop.f32.mrf.mxu0
        %v1771 = vadd.f32 %v1743, %v1770
        %v1772 = vpop.f32.mrf.mxu0
        %1773 = vdwg.mxu0
        %v1774 = vmax.f32 %v1771, 0.0
        %v1775 = vld [vmem:[#allocation6] sm:$0xff]
        %v1776 = vpack.c.bf16 %v1774, %v1774
        %v1777 = vld [vmem:[%s733] sm:$0xf]
        %v1778 = vld [vmem:[%s733 + $0x4] sm:$0xf]
        %v1779 = vld [vmem:[%s733 + $0x8] sm:$0xf]
        %v1780 = vld [vmem:[%s733 + $0xc] sm:$0xf]
        %v1781 = vld [vmem:[%s733 + $0x10] sm:$0xf]
        %v1782 = vld [vmem:[%s733 + $0x14] sm:$0xf]
        %v1783 = vld [vmem:[%s733 + $0x18] sm:$0xf]
        %v1784 = vld [vmem:[%s733 + $0x1c] sm:$0xf]
        %v1793 = vunpack.c.l.b16 %v1777
        %v1794 = vunpack.c.l.b16 %v1778
        %v1795 = vunpack.c.l.b16 %v1779
        %v1796 = vunpack.c.l.b16 %v1780
        %v1797 = vunpack.c.l.b16 %v1781
        %v1798 = vunpack.c.l.b16 %v1782
        %v1799 = vunpack.c.l.b16 %v1783
        %v1800 = vunpack.c.l.b16 %v1784
        %v1801 = vpack.c.b16 %v1794, %v1793
        %v1802 = vpack.c.b16 %v1796, %v1795
        %v1803 = vpack.c.b16 %v1798, %v1797
        %v1804 = vpack.c.b16 %v1800, %v1799
        %vm1809 = vcmask 523264
        %v1811 = vsel %vm1809, %v1776, 0
        %1813 = vmatpush.bf16.msra.mxu0 0
        %1814 = vmatpush.bf16.msra.mxu0 0
        %1815 = vmatpush.bf16.msra.mxu0 0
        %1816 = vmatpush.bf16.msra.mxu0 0
        %1817 = vmatpush.bf16.msra.mxu0 %v1804
        %1818 = vmatpush.bf16.msra.mxu0 %v1803
        %1819 = vmatpush.bf16.msra.mxu0 %v1802
        %1820 = vmatpush.bf16.msra.mxu0 %v1801
        %1821 = vmatmul.bf16.gmra.mxu0 %v1811
        %v1822 = vpop.f32.mrf.mxu0
        %v1823 = vadd.f32 0.0, %v1822
        %v1824 = vpop.f32.mrf.mxu0
        %1825 = vdwg.mxu0
        %v1826 = vadd.f32 %v1775, %v1823
        %1827 = vst.msk [vmem:[#allocation6] sm:$0xff] %vm1757, %v1826
        // Predicated region
        $region117: #{tpu_custom_call.1} parent=91 // pred_check
          %p1828 = pneg %p736
        $region118: #{tpu_custom_call.1} parent=91 // pred_check_branch
          %1830 = sbr.rel (%p1828) target = $region120
        $region119: #{tpu_custom_call.1} parent=91 // pred_region
          %v1831 = vld [vmem:[#allocation6] sm:$0xff]
          %v1832 = vld [vmem:[%s15] sm:$0x1]
          %v1834 = vperm.slane %v1832, 0
          %v1836 = vadd.f32 %v1831, %v1834
          %v1837 = vld [vmem:[#allocation4] sm:$0xff]
          %v1838 = vadd.f32 %v1837, %v1836
          %v1839 = vld [vmem:[%s16] sm:$0x1]
          %v1840 = vld [vmem:[%s17] sm:$0x1]
          %v1841 = vsel %vm1757, %v1838, 0.0
          %1842 = vadd.xlane.f32.xlu0 %v1841
          %v1843 = vpop.xlane.xlu0 %1842
          %v1844 = vrcp.pop 32.0
          %v1845 = vmul.f32 32.0, %v1844
          %v1846 = vsub.f32 1.0, %v1845
          %v1847 = vmul.f32 %v1844, %v1846
          %v1848 = vadd.f32 %v1844, %v1847
          %vm1849 = vweird.f32 %v1844
          %v1850 = vsel %vm1849, %v1844, %v1848
          %v1851 = vmul.f32 %v1843, %v1850
          %v1852 = vsub.f32 %v1838, %v1851
          %v1853 = vmul.f32 %v1852, %v1852
          %v1854 = vsel %vm1757, %v1853, 0.0
          %1855 = vadd.xlane.f32.xlu0 %v1854
          %v1856 = vpop.xlane.xlu0 %1855
          %v1857 = vmul.f32 %v1856, %v1850
          %v1858 = vadd.f32 %v1857, 1e-05
          %v1859 = vrsqrt.pop %v1858
          %v1860 = vmul.f32 %v1859, %v1858
          %v1861 = vmul.f32 %v1860, %v1859
          %v1862 = vmul.f32 0.5, %v1861
          %v1863 = vsub.f32 1.5, %v1862
          %v1864 = vmul.f32 %v1859, %v1863
          %vm1865 = vweird.f32 %v1858
          %vm1866 = vweird.f32 %v1859
          %vm1867 = vmor %vm1865, %vm1866
          %v1868 = vsel %vm1867, %v1859, %v1864
          %v1869 = vmul.f32 %v1852, %v1868
          %v1871 = vperm.slane %v1839, 0
          %v1873 = vmul.f32 %v1869, %v1871
          %v1875 = vperm.slane %v1840, 0
          %v1877 = vadd.f32 %v1873, %v1875
          %1878 = vst.msk [vmem:[%s718] sm:$0xff] %vm1757, %v1877
        $region120: #{tpu_custom_call.1} parent=91 // pred_fallthru
          _
        %s1879 = sand.u32 %s471, 1
        %s1880 = scalar_lea.sflag [#allocation9], %s1879
        %s1881 = sand.u32 %s471, 1
        %s1882 = smul.addr %s1881, 8
        %s1883 = scalar_lea.vmem [#allocation15], %s1882
        // Predicated region
        $region121: #{tpu_custom_call.1} parent=91 // pred_check
          %p1884 = pneg %p481
        $region122: #{tpu_custom_call.1} parent=91 // pred_check_branch
          %1886 = sbr.rel (%p1884) target = $region124
        $region123: #{tpu_custom_call.1} parent=91 // pred_region
          %1888 = vsyncadd %s1880, 0
          %s1889 = sadd.s32 %s43, %s42
          %s1890 = smul.addr %s1889, 8
          %s1891 = scalar_lea.hbm %s18, %s1890
          %s1893 = sshll.u32 %s1883, 4
          %s1894 = int_to_ptr.vmem [resolvable:$true] %s1893
          %s1895 = sshll.u32 %s1891, 4
          %s1896 = int_to_ptr.hbm [resolvable:$true] %s1895
          %1898 = dma.vmem_to_hbm [thread:$0]  %s1894, 128, %s1896, %s1880
        $region124: #{tpu_custom_call.1} parent=91 // pred_fallthru
          _
      $region92: #{tpu_custom_call.1} parent=5 // pred_fallthru
        _
      %p1899 = scmp.le.s32.totalorder 2, %s32
      // Predicated region
      $region125: #{tpu_custom_call.1} parent=5 // pred_check
        %p1900 = pneg %p1899
      $region126: #{tpu_custom_call.1} parent=5 // pred_check_branch
        %1902 = sbr.rel (%p1900) target = $region128
      $region127: #{tpu_custom_call.1} parent=5 // pred_region
        %s1903 = ssub.s32 %s32, 2
        // Predicated region
        $region129: #{tpu_custom_call.1} parent=127 // pred_check
          %p1904 = pneg %p487
        $region130: #{tpu_custom_call.1} parent=127 // pred_check_branch
          %1906 = sbr.rel (%p1904) target = $region132
        $region131: #{tpu_custom_call.1} parent=127 // pred_region
          %s1907 = sand.u32 %s472, 1
          %s1908 = scalar_lea.sflag [#allocation9], %s1907
          %s1909 = sand.u32 %s472, 1
          %s1910 = smul.addr %s1909, 8
          %s1911 = scalar_lea.vmem [#allocation15], %s1910
          %1913 = dma.done %s1908, 128
        $region132: #{tpu_custom_call.1} parent=127 // pred_fallthru
          _
      $region128: #{tpu_custom_call.1} parent=5 // pred_fallthru
        _
    $region6: #{tpu_custom_call.1} parent=1 // loop_footer
      %s36 = sadd.s32 1, %s32
    $region7: #{tpu_custom_call.1} parent=1 // loop_footer_branch
      %31 = sbr.rel target = $region3
    $region8: #{tpu_custom_call.1} parent=1 // loop_exit
      _
    %1914 = vsyncpa [#allocation8], 1
    %s1915 = scalar_lea.sflag [#allocation8], 1
    %1916 = vsyncpa %s1915, 1
    %1917 = vsyncpa [#allocation11], 1
    %1918 = vsyncpa [#allocation14], 1
    %1919 = vsyncpa [#allocation9], 1
    %s1920 = scalar_lea.sflag [#allocation9], 1
    %1921 = vsyncpa %s1920, 1

</llo_original>
